<compile_context>
chip_gen: v5e
topology: v5e:2x2
jax: 0.10.0
libtpu: 0.0.40
codegen_flags: <defaults>
</compile_context>

<pallas_src>
import math

import jax
import jax.numpy as jnp
import numpy as np
from jax.experimental import pallas as pl
from jax.experimental.pallas import tpu as pltpu


def _make_kernel(B, S, H, num_heads, head_dim, eps):
    scale = 1.0 / math.sqrt(head_dim)
    NB = num_heads * S  # lane width of the block-diagonal score matrix

    def kernel(x_ref, lnw_ref, lnb_ref, wqkv_ref, bqkv_ref, wo_ref, bo_ref,
               mask_ref, maskt_ref, out_ref):
        # ---------------- LayerNorm over hidden ----------------
        # attention_norm1 is applied to the same input for both branches in the
        # PyTorch module, so it is computed once and shared.
        xf = x_ref[...]                                          # (B*S, H)
        mu = jnp.mean(xf, axis=-1, keepdims=True)
        var = jnp.mean((xf - mu) ** 2, axis=-1, keepdims=True)
        xn = (xf - mu) * jax.lax.rsqrt(var + eps)
        xn = xn * lnw_ref[...] + lnb_ref[...]                    # (1,H) broadcasts

        # -------- fused QKV projection: one lane-dense matmul --------
        # columns: [q1 | k1 | v1 | q2 | k2 | v2], each H wide, head-major inside.
        qkv = (jnp.dot(xn, wqkv_ref[...], preferred_element_type=jnp.float32)
               + bqkv_ref[...])                                  # (B*S, 6H)

        # Head masks (built once on the host, loaded once here):
        #   mask[h*S + j, h'*head_dim + d] = 1.0 iff h == h'
        mask = mask_ref[...]                                     # (NB, H)
        maskt = maskt_ref[...]                                   # (H, NB)

        branch_ctx = []
        for r in range(2):                  # two attention branches (static)
            base = 3 * r * H
            ctx_rows = []
            for b in range(B):              # per batch element (static)
                r0 = b * S
                q = qkv[r0:r0 + S, base:base + H]                # (S, H)
                k = qkv[r0:r0 + S, base + H:base + 2 * H]        # (S, H)
                v = qkv[r0:r0 + S, base + 2 * H:base + 3 * H]    # (S, H)

                # All heads at once via a block-diagonal expansion of K:
                #   kbd[c, h*S + j] = K[j, c] if column c belongs to head h
                kbd = jnp.concatenate([k.T] * num_heads, axis=1) * maskt  # (H, NB)
                s = jnp.dot(q, kbd, preferred_element_type=jnp.float32) * scale
                # Per-row max is a constant shift within the row, so it cancels
                # in every head's softmax; every entry of `s` is a valid score.
                p = jnp.exp(s - jnp.max(s, axis=-1, keepdims=True))       # (S, NB)

                #   vbd[h*S + j, c] = V[j, c] if column c belongs to head h
                vbd = jnp.concatenate([v] * num_heads, axis=0) * mask     # (NB, H)
                ctx_num = jnp.dot(p, vbd, preferred_element_type=jnp.float32)  # (S, H)
                # Per-head softmax denominators, already broadcast to that
                # head's output lanes.
                denom = jnp.dot(p, mask, preferred_element_type=jnp.float32)   # (S, H)
                ctx_rows.append(ctx_num / denom)
            branch_ctx.append(jnp.concatenate(ctx_rows, axis=0))          # (B*S, H)

        # ---- fused output projections: block-diagonal (2H, 2H) weight ----
        # [ctx1 | ctx2] @ [[Wo1, 0], [0, Wo2]] + [bo1 | bo2] = [x1 | x2]
        ctx_cat = jnp.concatenate(branch_ctx, axis=1)                     # (B*S, 2H)
        xo = (jnp.dot(ctx_cat, wo_ref[...], preferred_element_type=jnp.float32)
              + bo_ref[...])                                              # (B*S, 2H)

        # ---- final per-batch bmm: out[b] = x1[b] @ x2[b]  (needs H == S) ----
        outs = []
        for b in range(B):
            r0 = b * S
            x1b = xo[r0:r0 + S, 0:H]
            x2b = xo[r0:r0 + S, H:2 * H]
            outs.append(jnp.dot(x1b, x2b, preferred_element_type=jnp.float32))
        out_ref[...] = jnp.concatenate(outs, axis=0)                      # (B*S, H)

    return kernel


def gatn_attention_block(x, params):
    """x: (B, S, H) float32; params: dict of (in, out) weights / (1, out) biases."""
    B, S, H = x.shape
    assert S == H, "torch.bmm(x1, x2) in the reference requires seq_len == hidden_size"
    num_heads = 1 if H in (11, 13, 17) else 4
    head_dim = H // num_heads

    # ---------- host-side packing (pure layout work on the params) ----------
    w_qkv = jnp.concatenate(
        [params["wq1"], params["wk1"], params["wv1"],
         params["wq2"], params["wk2"], params["wv2"]], axis=1)            # (H, 6H)
    b_qkv = jnp.concatenate(
        [params["bq1"], params["bk1"], params["bv1"],
         params["bq2"], params["bk2"], params["bv2"]], axis=1)            # (1, 6H)

    zeros = jnp.zeros((H, H), jnp.float32)
    w_o = jnp.concatenate(
        [jnp.concatenate([params["wo1"], zeros], axis=1),
         jnp.concatenate([zeros, params["wo2"]], axis=1)], axis=0)        # (2H, 2H)
    b_o = jnp.concatenate([params["bo1"], params["bo2"]], axis=1)         # (1, 2H)

    # Head block-diagonal mask: mask[h*S + j, h'*head_dim + d] = (h == h').
    row_head = jnp.arange(num_heads * S, dtype=jnp.int32)[:, None] // S
    col_head = jnp.arange(H, dtype=jnp.int32)[None, :] // head_dim
    mask = (row_head == col_head).astype(jnp.float32)                    # (nh*S, H)
    mask_t = mask.T                                                      # (H, nh*S)

    x2d = x.reshape(B * S, H)

    kernel = _make_kernel(B, S, H, num_heads, head_dim, 1e-6)
    vmem = pl.BlockSpec(memory_space=pltpu.MemorySpace.VMEM)

    # Single program: no grid, no per-step pipeline overhead; everything lives
    # in VMEM for the whole call.  For a large batch, reinstate a ("parallel",)
    # batch grid (kept a multiple of 2 on v7x so both TensorCores get work).
    out2d = pl.pallas_call(
        kernel,
        out_shape=jax.ShapeDtypeStruct((B * S, H), jnp.float32),
        in_specs=[vmem] * 9,
        out_specs=vmem,
    )(x2d, params["ln_w"], params["ln_b"], w_qkv, b_qkv, w_o, b_o, mask, mask_t)

    return out2d.reshape(B, S, H)


gatn_attention_block_jit = jax.jit(gatn_attention_block)


# ---------------------------------------------------------------------------
# Pure-JAX reference (mirrors the PyTorch forward) used only for verification.
# ---------------------------------------------------------------------------
def _reference(x, params):
    B, S, H = x.shape
    num_heads = 1 if H in (11, 13, 17) else 4
    head_dim = H // num_heads

    def layernorm(v):
        mu = jnp.mean(v, axis=-1, keepdims=True)
        var = jnp.mean((v - mu) ** 2, axis=-1, keepdims=True)
        return (v - mu) / jnp.sqrt(var + 1e-6) * params["ln_w"][0] + params["ln_b"][0]

    def attn(xn, p):
        q = xn @ params[f"wq{p}"] + params[f"bq{p}"][0]
        k = xn @ params[f"wk{p}"] + params[f"bk{p}"][0]
        v = xn @ params[f"wv{p}"] + params[f"bv{p}"][0]

        def split(t):
            return t.reshape(B, S, num_heads, head_dim).transpose(0, 2, 1, 3)

        qh, kh, vh = split(q), split(k), split(v)
        scores = jnp.einsum("bhqd,bhkd->bhqk", qh, kh) / math.sqrt(head_dim)
        probs = jax.nn.softmax(scores, axis=-1)
        ctx = jnp.einsum("bhqk,bhkd->bhqd", probs, vh)
        ctx = ctx.transpose(0, 2, 1, 3).reshape(B, S, H)
        return ctx @ params[f"wo{p}"] + params[f"bo{p}"][0]

    xn = layernorm(x)
    x1 = attn(xn, 1)
    x2 = attn(xn, 2)
    return jnp.einsum("bij,bjk->bik", x1, x2)


def _init_params(key, H):
    ks = jax.random.split(key, 18)
    bound = 1.0 / math.sqrt(H)

    def lin_w(k):  # stored as (in, out) == transpose of PyTorch Linear.weight
        return jax.random.uniform(k, (H, H), jnp.float32, -bound, bound)

    def lin_b(k):
        return jax.random.uniform(k, (1, H), jnp.float32, -bound, bound)

    names = ["wq1", "bq1", "wk1", "bk1", "wv1", "bv1", "wo1", "bo1",
             "wq2", "bq2", "wk2", "bk2", "wv2", "bv2", "wo2", "bo2"]
    params = {}
    for i, n in enumerate(names):
        params[n] = lin_w(ks[i]) if n.startswith("w") else lin_b(ks[i])
    # Non-trivial LayerNorm affine so the test actually exercises it.
    params["ln_w"] = 1.0 + 0.1 * jax.random.normal(ks[16], (1, H), jnp.float32)
    params["ln_b"] = 0.1 * jax.random.normal(ks[17], (1, H), jnp.float32)
    return params


if __name__ == "__main__":
    B, S, H = 2, 32, 32  # seq == hidden, required by the final bmm in the module
    key = jax.random.PRNGKey(0)
    kx, kp = jax.random.split(key)
    x = jax.random.normal(kx, (B, S, H), jnp.float32)
    params = _init_params(kp, H)

    out = gatn_attention_block_jit(x, params)
    out = jax.block_until_ready(out)

    ref = _reference(x, params)
    np.testing.assert_allclose(np.asarray(out), np.asarray(ref), rtol=1e-3, atol=1e-3)

    print("KERNEL_OK")
</pallas_src>

<mosaic_0001>
module attributes {stable_mosaic.version = 11 : i64} {
  func.func @kernel(%arg0: memref<64x32xf32, #tpu.memory_space<vmem>>, %arg1: memref<1x32xf32, #tpu.memory_space<vmem>>, %arg2: memref<1x32xf32, #tpu.memory_space<vmem>>, %arg3: memref<32x192xf32, #tpu.memory_space<vmem>>, %arg4: memref<1x192xf32, #tpu.memory_space<vmem>>, %arg5: memref<64x64xf32, #tpu.memory_space<vmem>>, %arg6: memref<1x64xf32, #tpu.memory_space<vmem>>, %arg7: memref<128x32xf32, #tpu.memory_space<vmem>>, %arg8: memref<32x128xf32, #tpu.memory_space<vmem>>, %arg9: memref<64x32xf32, #tpu.memory_space<vmem>>) attributes {dimension_semantics = [], scalar_prefetch = 0 : i64, scratch_operands = 0 : i64, tpu.core_type = #tpu.core_type<tc>} {
    %c0 = arith.constant 0 : index
    %c0_0 = arith.constant 0 : index
    %0 = vector.load %arg0[%c0, %c0_0] : memref<64x32xf32, #tpu.memory_space<vmem>>, vector<64x32xf32>
    %cst = arith.constant dense<0.000000e+00> : vector<64xf32>
    %1 = vector.multi_reduction <add>, %0, %cst [1] : vector<64x32xf32> to vector<64xf32>
    %2 = vector.shape_cast %1 : vector<64xf32> to vector<64x1xf32>
    %cst_1 = arith.constant 3.200000e+01 : f32
    %3 = vector.broadcast %cst_1 : f32 to vector<64x1xf32>
    %4 = arith.divf %2, %3 : vector<64x1xf32>
    %5 = vector.broadcast %4 : vector<64x1xf32> to vector<64x32xf32>
    %6 = arith.subf %0, %5 : vector<64x32xf32>
    %7 = arith.mulf %6, %6 : vector<64x32xf32>
    %cst_2 = arith.constant dense<0.000000e+00> : vector<64xf32>
    %8 = vector.multi_reduction <add>, %7, %cst_2 [1] : vector<64x32xf32> to vector<64xf32>
    %9 = vector.shape_cast %8 : vector<64xf32> to vector<64x1xf32>
    %cst_3 = arith.constant 3.200000e+01 : f32
    %10 = vector.broadcast %cst_3 : f32 to vector<64x1xf32>
    %11 = arith.divf %9, %10 : vector<64x1xf32>
    %12 = vector.broadcast %4 : vector<64x1xf32> to vector<64x32xf32>
    %13 = arith.subf %0, %12 : vector<64x32xf32>
    %cst_4 = arith.constant 9.99999997E-7 : f32
    %14 = vector.broadcast %cst_4 : f32 to vector<64x1xf32>
    %15 = arith.addf %11, %14 : vector<64x1xf32>
    %16 = math.rsqrt %15 : vector<64x1xf32>
    %17 = vector.broadcast %16 : vector<64x1xf32> to vector<64x32xf32>
    %18 = arith.mulf %13, %17 : vector<64x32xf32>
    %c0_5 = arith.constant 0 : index
    %c0_6 = arith.constant 0 : index
    %19 = vector.load %arg1[%c0_5, %c0_6] : memref<1x32xf32, #tpu.memory_space<vmem>>, vector<1x32xf32>
    %20 = vector.broadcast %19 : vector<1x32xf32> to vector<64x32xf32>
    %21 = arith.mulf %18, %20 : vector<64x32xf32>
    %c0_7 = arith.constant 0 : index
    %c0_8 = arith.constant 0 : index
    %22 = vector.load %arg2[%c0_7, %c0_8] : memref<1x32xf32, #tpu.memory_space<vmem>>, vector<1x32xf32>
    %23 = vector.broadcast %22 : vector<1x32xf32> to vector<64x32xf32>
    %24 = arith.addf %21, %23 : vector<64x32xf32>
    %c0_9 = arith.constant 0 : index
    %c0_10 = arith.constant 0 : index
    %25 = vector.load %arg3[%c0_9, %c0_10] : memref<32x192xf32, #tpu.memory_space<vmem>>, vector<32x192xf32>
    %cst_11 = arith.constant dense<0.000000e+00> : vector<64x192xf32>
    %26 = tpu.matmul %24, %25, %cst_11 {dimension_numbers = #tpu.dot_dimension_numbers<[1], [0], [0], [1], [0, 0, 1, 1], [], []>} : vector<64x32xf32>, vector<32x192xf32>, vector<64x192xf32> -> vector<64x192xf32>
    %c0_12 = arith.constant 0 : index
    %c0_13 = arith.constant 0 : index
    %27 = vector.load %arg4[%c0_12, %c0_13] : memref<1x192xf32, #tpu.memory_space<vmem>>, vector<1x192xf32>
    %28 = vector.broadcast %27 : vector<1x192xf32> to vector<64x192xf32>
    %29 = arith.addf %26, %28 : vector<64x192xf32>
    %c0_14 = arith.constant 0 : index
    %c0_15 = arith.constant 0 : index
    %30 = vector.load %arg7[%c0_14, %c0_15] : memref<128x32xf32, #tpu.memory_space<vmem>>, vector<128x32xf32>
    %c0_16 = arith.constant 0 : index
    %c0_17 = arith.constant 0 : index
    %31 = vector.load %arg8[%c0_16, %c0_17] : memref<32x128xf32, #tpu.memory_space<vmem>>, vector<32x128xf32>
    %32 = vector.extract_strided_slice %29 {offsets = [0, 0], sizes = [32, 32], strides = [1, 1]} : vector<64x192xf32> to vector<32x32xf32>
    %33 = vector.extract_strided_slice %29 {offsets = [0, 32], sizes = [32, 32], strides = [1, 1]} : vector<64x192xf32> to vector<32x32xf32>
    %34 = vector.extract_strided_slice %29 {offsets = [0, 64], sizes = [32, 32], strides = [1, 1]} : vector<64x192xf32> to vector<32x32xf32>
    %35 = tpu.transpose %33, [1, 0] : vector<32x32xf32> -> vector<32x32xf32>
    %36 = tpu.concatenate %35, %35, %35, %35 in 1 : vector<32x32xf32>, vector<32x32xf32>, vector<32x32xf32>, vector<32x32xf32> -> vector<32x128xf32>
    %37 = arith.mulf %36, %31 : vector<32x128xf32>
    %cst_18 = arith.constant dense<0.000000e+00> : vector<32x128xf32>
    %38 = tpu.matmul %32, %37, %cst_18 {dimension_numbers = #tpu.dot_dimension_numbers<[1], [0], [0], [1], [0, 0, 1, 1], [], []>} : vector<32x32xf32>, vector<32x128xf32>, vector<32x128xf32> -> vector<32x128xf32>
    %cst_19 = arith.constant 0.353553385 : f32
    %39 = vector.broadcast %cst_19 : f32 to vector<32x128xf32>
    %40 = arith.mulf %38, %39 : vector<32x128xf32>
    %cst_20 = arith.constant dense<0xFF800000> : vector<32xf32>
    %41 = vector.multi_reduction <maximumf>, %40, %cst_20 [1] : vector<32x128xf32> to vector<32xf32>
    %42 = vector.shape_cast %41 : vector<32xf32> to vector<32x1xf32>
    %43 = vector.broadcast %42 : vector<32x1xf32> to vector<32x128xf32>
    %44 = arith.subf %40, %43 : vector<32x128xf32>
    %45 = math.exp %44 : vector<32x128xf32>
    %46 = tpu.concatenate %34, %34, %34, %34 in 0 : vector<32x32xf32>, vector<32x32xf32>, vector<32x32xf32>, vector<32x32xf32> -> vector<128x32xf32>
    %47 = arith.mulf %46, %30 : vector<128x32xf32>
    %cst_21 = arith.constant dense<0.000000e+00> : vector<32x32xf32>
    %48 = tpu.matmul %45, %47, %cst_21 {dimension_numbers = #tpu.dot_dimension_numbers<[1], [0], [0], [1], [0, 0, 1, 1], [], []>} : vector<32x128xf32>, vector<128x32xf32>, vector<32x32xf32> -> vector<32x32xf32>
    %cst_22 = arith.constant dense<0.000000e+00> : vector<32x32xf32>
    %49 = tpu.matmul %45, %30, %cst_22 {dimension_numbers = #tpu.dot_dimension_numbers<[1], [0], [0], [1], [0, 0, 1, 1], [], []>} : vector<32x128xf32>, vector<128x32xf32>, vector<32x32xf32> -> vector<32x32xf32>
    %50 = arith.divf %48, %49 : vector<32x32xf32>
    %51 = vector.extract_strided_slice %29 {offsets = [32, 0], sizes = [32, 32], strides = [1, 1]} : vector<64x192xf32> to vector<32x32xf32>
    %52 = vector.extract_strided_slice %29 {offsets = [32, 32], sizes = [32, 32], strides = [1, 1]} : vector<64x192xf32> to vector<32x32xf32>
    %53 = vector.extract_strided_slice %29 {offsets = [32, 64], sizes = [32, 32], strides = [1, 1]} : vector<64x192xf32> to vector<32x32xf32>
    %54 = tpu.transpose %52, [1, 0] : vector<32x32xf32> -> vector<32x32xf32>
    %55 = tpu.concatenate %54, %54, %54, %54 in 1 : vector<32x32xf32>, vector<32x32xf32>, vector<32x32xf32>, vector<32x32xf32> -> vector<32x128xf32>
    %56 = arith.mulf %55, %31 : vector<32x128xf32>
    %cst_23 = arith.constant dense<0.000000e+00> : vector<32x128xf32>
    %57 = tpu.matmul %51, %56, %cst_23 {dimension_numbers = #tpu.dot_dimension_numbers<[1], [0], [0], [1], [0, 0, 1, 1], [], []>} : vector<32x32xf32>, vector<32x128xf32>, vector<32x128xf32> -> vector<32x128xf32>
    %cst_24 = arith.constant 0.353553385 : f32
    %58 = vector.broadcast %cst_24 : f32 to vector<32x128xf32>
    %59 = arith.mulf %57, %58 : vector<32x128xf32>
    %cst_25 = arith.constant dense<0xFF800000> : vector<32xf32>
    %60 = vector.multi_reduction <maximumf>, %59, %cst_25 [1] : vector<32x128xf32> to vector<32xf32>
    %61 = vector.shape_cast %60 : vector<32xf32> to vector<32x1xf32>
    %62 = vector.broadcast %61 : vector<32x1xf32> to vector<32x128xf32>
    %63 = arith.subf %59, %62 : vector<32x128xf32>
    %64 = math.exp %63 : vector<32x128xf32>
    %65 = tpu.concatenate %53, %53, %53, %53 in 0 : vector<32x32xf32>, vector<32x32xf32>, vector<32x32xf32>, vector<32x32xf32> -> vector<128x32xf32>
    %66 = arith.mulf %65, %30 : vector<128x32xf32>
    %cst_26 = arith.constant dense<0.000000e+00> : vector<32x32xf32>
    %67 = tpu.matmul %64, %66, %cst_26 {dimension_numbers = #tpu.dot_dimension_numbers<[1], [0], [0], [1], [0, 0, 1, 1], [], []>} : vector<32x128xf32>, vector<128x32xf32>, vector<32x32xf32> -> vector<32x32xf32>
    %cst_27 = arith.constant dense<0.000000e+00> : vector<32x32xf32>
    %68 = tpu.matmul %64, %30, %cst_27 {dimension_numbers = #tpu.dot_dimension_numbers<[1], [0], [0], [1], [0, 0, 1, 1], [], []>} : vector<32x128xf32>, vector<128x32xf32>, vector<32x32xf32> -> vector<32x32xf32>
    %69 = arith.divf %67, %68 : vector<32x32xf32>
    %70 = tpu.concatenate %50, %69 in 0 : vector<32x32xf32>, vector<32x32xf32> -> vector<64x32xf32>
    %71 = vector.extract_strided_slice %29 {offsets = [0, 96], sizes = [32, 32], strides = [1, 1]} : vector<64x192xf32> to vector<32x32xf32>
    %72 = vector.extract_strided_slice %29 {offsets = [0, 128], sizes = [32, 32], strides = [1, 1]} : vector<64x192xf32> to vector<32x32xf32>
    %73 = vector.extract_strided_slice %29 {offsets = [0, 160], sizes = [32, 32], strides = [1, 1]} : vector<64x192xf32> to vector<32x32xf32>
    %74 = tpu.transpose %72, [1, 0] : vector<32x32xf32> -> vector<32x32xf32>
    %75 = tpu.concatenate %74, %74, %74, %74 in 1 : vector<32x32xf32>, vector<32x32xf32>, vector<32x32xf32>, vector<32x32xf32> -> vector<32x128xf32>
    %76 = arith.mulf %75, %31 : vector<32x128xf32>
    %cst_28 = arith.constant dense<0.000000e+00> : vector<32x128xf32>
    %77 = tpu.matmul %71, %76, %cst_28 {dimension_numbers = #tpu.dot_dimension_numbers<[1], [0], [0], [1], [0, 0, 1, 1], [], []>} : vector<32x32xf32>, vector<32x128xf32>, vector<32x128xf32> -> vector<32x128xf32>
    %cst_29 = arith.constant 0.353553385 : f32
    %78 = vector.broadcast %cst_29 : f32 to vector<32x128xf32>
    %79 = arith.mulf %77, %78 : vector<32x128xf32>
    %cst_30 = arith.constant dense<0xFF800000> : vector<32xf32>
    %80 = vector.multi_reduction <maximumf>, %79, %cst_30 [1] : vector<32x128xf32> to vector<32xf32>
    %81 = vector.shape_cast %80 : vector<32xf32> to vector<32x1xf32>
    %82 = vector.broadcast %81 : vector<32x1xf32> to vector<32x128xf32>
    %83 = arith.subf %79, %82 : vector<32x128xf32>
    %84 = math.exp %83 : vector<32x128xf32>
    %85 = tpu.concatenate %73, %73, %73, %73 in 0 : vector<32x32xf32>, vector<32x32xf32>, vector<32x32xf32>, vector<32x32xf32> -> vector<128x32xf32>
    %86 = arith.mulf %85, %30 : vector<128x32xf32>
    %cst_31 = arith.constant dense<0.000000e+00> : vector<32x32xf32>
    %87 = tpu.matmul %84, %86, %cst_31 {dimension_numbers = #tpu.dot_dimension_numbers<[1], [0], [0], [1], [0, 0, 1, 1], [], []>} : vector<32x128xf32>, vector<128x32xf32>, vector<32x32xf32> -> vector<32x32xf32>
    %cst_32 = arith.constant dense<0.000000e+00> : vector<32x32xf32>
    %88 = tpu.matmul %84, %30, %cst_32 {dimension_numbers = #tpu.dot_dimension_numbers<[1], [0], [0], [1], [0, 0, 1, 1], [], []>} : vector<32x128xf32>, vector<128x32xf32>, vector<32x32xf32> -> vector<32x32xf32>
    %89 = arith.divf %87, %88 : vector<32x32xf32>
    %90 = vector.extract_strided_slice %29 {offsets = [32, 96], sizes = [32, 32], strides = [1, 1]} : vector<64x192xf32> to vector<32x32xf32>
    %91 = vector.extract_strided_slice %29 {offsets = [32, 128], sizes = [32, 32], strides = [1, 1]} : vector<64x192xf32> to vector<32x32xf32>
    %92 = vector.extract_strided_slice %29 {offsets = [32, 160], sizes = [32, 32], strides = [1, 1]} : vector<64x192xf32> to vector<32x32xf32>
    %93 = tpu.transpose %91, [1, 0] : vector<32x32xf32> -> vector<32x32xf32>
    %94 = tpu.concatenate %93, %93, %93, %93 in 1 : vector<32x32xf32>, vector<32x32xf32>, vector<32x32xf32>, vector<32x32xf32> -> vector<32x128xf32>
    %95 = arith.mulf %94, %31 : vector<32x128xf32>
    %cst_33 = arith.constant dense<0.000000e+00> : vector<32x128xf32>
    %96 = tpu.matmul %90, %95, %cst_33 {dimension_numbers = #tpu.dot_dimension_numbers<[1], [0], [0], [1], [0, 0, 1, 1], [], []>} : vector<32x32xf32>, vector<32x128xf32>, vector<32x128xf32> -> vector<32x128xf32>
    %cst_34 = arith.constant 0.353553385 : f32
    %97 = vector.broadcast %cst_34 : f32 to vector<32x128xf32>
    %98 = arith.mulf %96, %97 : vector<32x128xf32>
    %cst_35 = arith.constant dense<0xFF800000> : vector<32xf32>
    %99 = vector.multi_reduction <maximumf>, %98, %cst_35 [1] : vector<32x128xf32> to vector<32xf32>
    %100 = vector.shape_cast %99 : vector<32xf32> to vector<32x1xf32>
    %101 = vector.broadcast %100 : vector<32x1xf32> to vector<32x128xf32>
    %102 = arith.subf %98, %101 : vector<32x128xf32>
    %103 = math.exp %102 : vector<32x128xf32>
    %104 = tpu.concatenate %92, %92, %92, %92 in 0 : vector<32x32xf32>, vector<32x32xf32>, vector<32x32xf32>, vector<32x32xf32> -> vector<128x32xf32>
    %105 = arith.mulf %104, %30 : vector<128x32xf32>
    %cst_36 = arith.constant dense<0.000000e+00> : vector<32x32xf32>
    %106 = tpu.matmul %103, %105, %cst_36 {dimension_numbers = #tpu.dot_dimension_numbers<[1], [0], [0], [1], [0, 0, 1, 1], [], []>} : vector<32x128xf32>, vector<128x32xf32>, vector<32x32xf32> -> vector<32x32xf32>
    %cst_37 = arith.constant dense<0.000000e+00> : vector<32x32xf32>
    %107 = tpu.matmul %103, %30, %cst_37 {dimension_numbers = #tpu.dot_dimension_numbers<[1], [0], [0], [1], [0, 0, 1, 1], [], []>} : vector<32x128xf32>, vector<128x32xf32>, vector<32x32xf32> -> vector<32x32xf32>
    %108 = arith.divf %106, %107 : vector<32x32xf32>
    %109 = tpu.concatenate %89, %108 in 0 : vector<32x32xf32>, vector<32x32xf32> -> vector<64x32xf32>
    %110 = tpu.concatenate %70, %109 in 1 : vector<64x32xf32>, vector<64x32xf32> -> vector<64x64xf32>
    %c0_38 = arith.constant 0 : index
    %c0_39 = arith.constant 0 : index
    %111 = vector.load %arg5[%c0_38, %c0_39] : memref<64x64xf32, #tpu.memory_space<vmem>>, vector<64x64xf32>
    %cst_40 = arith.constant dense<0.000000e+00> : vector<64x64xf32>
    %112 = tpu.matmul %110, %111, %cst_40 {dimension_numbers = #tpu.dot_dimension_numbers<[1], [0], [0], [1], [0, 0, 1, 1], [], []>} : vector<64x64xf32>, vector<64x64xf32>, vector<64x64xf32> -> vector<64x64xf32>
    %c0_41 = arith.constant 0 : index
    %c0_42 = arith.constant 0 : index
    %113 = vector.load %arg6[%c0_41, %c0_42] : memref<1x64xf32, #tpu.memory_space<vmem>>, vector<1x64xf32>
    %114 = vector.broadcast %113 : vector<1x64xf32> to vector<64x64xf32>
    %115 = arith.addf %112, %114 : vector<64x64xf32>
    %116 = vector.extract_strided_slice %115 {offsets = [0, 0], sizes = [32, 32], strides = [1, 1]} : vector<64x64xf32> to vector<32x32xf32>
    %117 = vector.extract_strided_slice %115 {offsets = [0, 32], sizes = [32, 32], strides = [1, 1]} : vector<64x64xf32> to vector<32x32xf32>
    %cst_43 = arith.constant dense<0.000000e+00> : vector<32x32xf32>
    %118 = tpu.matmul %116, %117, %cst_43 {dimension_numbers = #tpu.dot_dimension_numbers<[1], [0], [0], [1], [0, 0, 1, 1], [], []>} : vector<32x32xf32>, vector<32x32xf32>, vector<32x32xf32> -> vector<32x32xf32>
    %119 = vector.extract_strided_slice %115 {offsets = [32, 0], sizes = [32, 32], strides = [1, 1]} : vector<64x64xf32> to vector<32x32xf32>
    %120 = vector.extract_strided_slice %115 {offsets = [32, 32], sizes = [32, 32], strides = [1, 1]} : vector<64x64xf32> to vector<32x32xf32>
    %cst_44 = arith.constant dense<0.000000e+00> : vector<32x32xf32>
    %121 = tpu.matmul %119, %120, %cst_44 {dimension_numbers = #tpu.dot_dimension_numbers<[1], [0], [0], [1], [0, 0, 1, 1], [], []>} : vector<32x32xf32>, vector<32x32xf32>, vector<32x32xf32> -> vector<32x32xf32>
    %122 = tpu.concatenate %118, %121 in 0 : vector<32x32xf32>, vector<32x32xf32> -> vector<64x32xf32>
    %c0_45 = arith.constant 0 : index
    %c0_46 = arith.constant 0 : index
    %123 = vector.load %arg9[%c0_45, %c0_46] : memref<64x32xf32, #tpu.memory_space<vmem>>, vector<64x32xf32>
    tpu.vector_store %arg9[%c0_45, %c0_46], %122 {strides = array<i32>} : memref<64x32xf32, #tpu.memory_space<vmem>>, vector<64x32xf32>,
    return
  }
}

</mosaic_0001>

<llo_original>
// kernel: gatn_attention_block.1
$region0: #{gatn_attention_block.1}
  #allocation0 [shape = 'u32[]', space=smem, size = 0x4, offset = 0x4, fixed_abs, tag = 'smem constant byte address 0x4 - core index']
  #allocation1 [shape = 'u32[72,128]{1,0:T(1,128)}', space=vmem, size = 0x9000, scoped, tag = 'internal scratch']
  %s0 = inlined_call_operand.vmem [shape: f32[64,32], index: 0, kind: input, shape index: {}]
  %s1 = inlined_call_operand.vmem [shape: f32[1,32], index: 1, kind: input, shape index: {}]
  %s2 = inlined_call_operand.vmem [shape: f32[1,32], index: 2, kind: input, shape index: {}]
  %s3 = inlined_call_operand.vmem [shape: f32[32,192], index: 3, kind: input, shape index: {}]
  %s4 = inlined_call_operand.vmem [shape: f32[1,192], index: 4, kind: input, shape index: {}]
  %s5 = inlined_call_operand.vmem [shape: f32[64,64], index: 5, kind: input, shape index: {}]
  %s6 = inlined_call_operand.vmem [shape: f32[1,64], index: 6, kind: input, shape index: {}]
  %s7 = inlined_call_operand.vmem [shape: f32[128,32], index: 7, kind: input, shape index: {}]
  %s8 = inlined_call_operand.vmem [shape: f32[32,128], index: 8, kind: input, shape index: {}]
  %s9 = inlined_call_operand.hbm [shape: f32[64,32], index: 9, kind: output, shape index: {}]
  %s10 = sld [smem:[#allocation0]]
  $region46: #{gatn_attention_block.1} parent=0
    _
  %s12 = ssub.s32 1, %s10
  %s13 = scalar_select 0, %s12, %s10
  $region1: #{gatn_attention_block.1} parent=0
    #allocation2 [shape = 'u8[32768]{0}', space=vmem, size = 0x8000, scoped, tag = 'output window, operand 0, single buffered']
    #allocation3 [shape = 's32[1]{0}', space=sflag, size = 0x4, scoped, tag = 'scoped memory for gatn_attention_block.1']
    %14 = vsyncpa [#allocation3], 0
    // Predicated region
    $region2: #{gatn_attention_block.1} parent=1 // pred_check
      _
    $region3: #{gatn_attention_block.1} parent=1 // pred_check_branch
      %16 = sbr.rel (0) target = $region5
    $region4: #{gatn_attention_block.1} parent=1 // pred_region
      _
    $region5: #{gatn_attention_block.1} parent=1 // pred_fallthru
      _
    // Predicated region
    $region6: #{gatn_attention_block.1} parent=1 // pred_check
      _
    $region7: #{gatn_attention_block.1} parent=1 // pred_check_branch
      %18 = sbr.rel (0) target = $region9
    $region8: #{gatn_attention_block.1} parent=1 // pred_region
      _
    $region9: #{gatn_attention_block.1} parent=1 // pred_fallthru
      _
    // Predicated region
    $region10: #{gatn_attention_block.1} parent=1 // pred_check
      _
    $region11: #{gatn_attention_block.1} parent=1 // pred_check_branch
      %20 = sbr.rel (0) target = $region13
    $region12: #{gatn_attention_block.1} parent=1 // pred_region
      _
    $region13: #{gatn_attention_block.1} parent=1 // pred_fallthru
      _
    // Predicated region
    $region14: #{gatn_attention_block.1} parent=1 // pred_check
      _
    $region15: #{gatn_attention_block.1} parent=1 // pred_check_branch
      %22 = sbr.rel (0) target = $region17
    $region16: #{gatn_attention_block.1} parent=1 // pred_region
      _
    $region17: #{gatn_attention_block.1} parent=1 // pred_fallthru
      _
    // Predicated region
    $region18: #{gatn_attention_block.1} parent=1 // pred_check
      _
    $region19: #{gatn_attention_block.1} parent=1 // pred_check_branch
      %24 = sbr.rel (0) target = $region21
    $region20: #{gatn_attention_block.1} parent=1 // pred_region
      _
    $region21: #{gatn_attention_block.1} parent=1 // pred_fallthru
      _
    // Predicated region
    $region22: #{gatn_attention_block.1} parent=1 // pred_check
      _
    $region23: #{gatn_attention_block.1} parent=1 // pred_check_branch
      %26 = sbr.rel (0) target = $region25
    $region24: #{gatn_attention_block.1} parent=1 // pred_region
      _
    $region25: #{gatn_attention_block.1} parent=1 // pred_fallthru
      _
    // Predicated region
    $region26: #{gatn_attention_block.1} parent=1 // pred_check
      _
    $region27: #{gatn_attention_block.1} parent=1 // pred_check_branch
      %28 = sbr.rel (0) target = $region29
    $region28: #{gatn_attention_block.1} parent=1 // pred_region
      _
    $region29: #{gatn_attention_block.1} parent=1 // pred_fallthru
      _
    // Predicated region
    $region30: #{gatn_attention_block.1} parent=1 // pred_check
      _
    $region31: #{gatn_attention_block.1} parent=1 // pred_check_branch
      %30 = sbr.rel (0) target = $region33
    $region32: #{gatn_attention_block.1} parent=1 // pred_region
      _
    $region33: #{gatn_attention_block.1} parent=1 // pred_fallthru
      _
    // Predicated region
    $region34: #{gatn_attention_block.1} parent=1 // pred_check
      _
    $region35: #{gatn_attention_block.1} parent=1 // pred_check_branch
      %32 = sbr.rel (0) target = $region37
    $region36: #{gatn_attention_block.1} parent=1 // pred_region
      _
    $region37: #{gatn_attention_block.1} parent=1 // pred_fallthru
      _
    %v33 = vld [vmem:[%s0] sm:$0xff]
    %v34 = vld [vmem:[%s0 + $0x8] sm:$0xff]
    %v35 = vld [vmem:[%s0 + $0x10] sm:$0xff]
    %v36 = vld [vmem:[%s0 + $0x18] sm:$0xff]
    %v37 = vld [vmem:[%s0 + $0x20] sm:$0xff]
    %v38 = vld [vmem:[%s0 + $0x28] sm:$0xff]
    %v39 = vld [vmem:[%s0 + $0x30] sm:$0xff]
    %v40 = vld [vmem:[%s0 + $0x38] sm:$0xff]
    %vm41 = vcmask 261120
    %v42 = vsel %vm41, %v33, 0.0
    %43 = vadd.xlane.f32.xlu0 %v42
    %v44 = vpop.xlane.xlu0 %43
    %v45 = vsel %vm41, %v34, 0.0
    %46 = vadd.xlane.f32.xlu0 %v45
    %v47 = vpop.xlane.xlu0 %46
    %v48 = vsel %vm41, %v35, 0.0
    %49 = vadd.xlane.f32.xlu0 %v48
    %v50 = vpop.xlane.xlu0 %49
    %v51 = vsel %vm41, %v36, 0.0
    %52 = vadd.xlane.f32.xlu0 %v51
    %v53 = vpop.xlane.xlu0 %52
    %v54 = vsel %vm41, %v37, 0.0
    %55 = vadd.xlane.f32.xlu0 %v54
    %v56 = vpop.xlane.xlu0 %55
    %v57 = vsel %vm41, %v38, 0.0
    %58 = vadd.xlane.f32.xlu0 %v57
    %v59 = vpop.xlane.xlu0 %58
    %v60 = vsel %vm41, %v39, 0.0
    %61 = vadd.xlane.f32.xlu0 %v60
    %v62 = vpop.xlane.xlu0 %61
    %v63 = vsel %vm41, %v40, 0.0
    %64 = vadd.xlane.f32.xlu0 %v63
    %v65 = vpop.xlane.xlu0 %64
    %v66 = vrcp.pop 32.0
    %v67 = vmul.f32 32.0, %v66
    %v68 = vsub.f32 1.0, %v67
    %v69 = vmul.f32 %v66, %v68
    %v70 = vadd.f32 %v66, %v69
    %vm71 = vweird.f32 %v66
    %v72 = vsel %vm71, %v66, %v70
    %v73 = vmul.f32 %v44, %v72
    %v74 = vmul.f32 %v47, %v72
    %v75 = vmul.f32 %v50, %v72
    %v76 = vmul.f32 %v53, %v72
    %v77 = vmul.f32 %v56, %v72
    %v78 = vmul.f32 %v59, %v72
    %v79 = vmul.f32 %v62, %v72
    %v80 = vmul.f32 %v65, %v72
    %v81 = vsub.f32 %v33, %v73
    %v82 = vsub.f32 %v34, %v74
    %v83 = vsub.f32 %v35, %v75
    %v84 = vsub.f32 %v36, %v76
    %v85 = vsub.f32 %v37, %v77
    %v86 = vsub.f32 %v38, %v78
    %v87 = vsub.f32 %v39, %v79
    %v88 = vsub.f32 %v40, %v80
    %v89 = vmul.f32 %v81, %v81
    %v90 = vmul.f32 %v82, %v82
    %v91 = vmul.f32 %v83, %v83
    %v92 = vmul.f32 %v84, %v84
    %v93 = vmul.f32 %v85, %v85
    %v94 = vmul.f32 %v86, %v86
    %v95 = vmul.f32 %v87, %v87
    %v96 = vmul.f32 %v88, %v88
    %v97 = vsel %vm41, %v89, 0.0
    %98 = vadd.xlane.f32.xlu0 %v97
    %v99 = vpop.xlane.xlu0 %98
    %v100 = vsel %vm41, %v90, 0.0
    %101 = vadd.xlane.f32.xlu0 %v100
    %v102 = vpop.xlane.xlu0 %101
    %v103 = vsel %vm41, %v91, 0.0
    %104 = vadd.xlane.f32.xlu0 %v103
    %v105 = vpop.xlane.xlu0 %104
    %v106 = vsel %vm41, %v92, 0.0
    %107 = vadd.xlane.f32.xlu0 %v106
    %v108 = vpop.xlane.xlu0 %107
    %v109 = vsel %vm41, %v93, 0.0
    %110 = vadd.xlane.f32.xlu0 %v109
    %v111 = vpop.xlane.xlu0 %110
    %v112 = vsel %vm41, %v94, 0.0
    %113 = vadd.xlane.f32.xlu0 %v112
    %v114 = vpop.xlane.xlu0 %113
    %v115 = vsel %vm41, %v95, 0.0
    %116 = vadd.xlane.f32.xlu0 %v115
    %v117 = vpop.xlane.xlu0 %116
    %v118 = vsel %vm41, %v96, 0.0
    %119 = vadd.xlane.f32.xlu0 %v118
    %v120 = vpop.xlane.xlu0 %119
    %v121 = vmul.f32 %v99, %v72
    %v122 = vmul.f32 %v102, %v72
    %v123 = vmul.f32 %v105, %v72
    %v124 = vmul.f32 %v108, %v72
    %v125 = vmul.f32 %v111, %v72
    %v126 = vmul.f32 %v114, %v72
    %v127 = vmul.f32 %v117, %v72
    %v128 = vmul.f32 %v120, %v72
    %v129 = vadd.f32 %v121, 1e-06
    %v130 = vadd.f32 %v122, 1e-06
    %v131 = vadd.f32 %v123, 1e-06
    %v132 = vadd.f32 %v124, 1e-06
    %v133 = vadd.f32 %v125, 1e-06
    %v134 = vadd.f32 %v126, 1e-06
    %v135 = vadd.f32 %v127, 1e-06
    %v136 = vadd.f32 %v128, 1e-06
    %v137 = vrsqrt.pop %v129
    %v138 = vmul.f32 %v137, %v129
    %v139 = vmul.f32 %v138, %v137
    %v140 = vmul.f32 0.5, %v139
    %v141 = vsub.f32 1.5, %v140
    %v142 = vmul.f32 %v137, %v141
    %vm143 = vweird.f32 %v129
    %vm144 = vweird.f32 %v137
    %vm145 = vmor %vm143, %vm144
    %v146 = vsel %vm145, %v137, %v142
    %v147 = vrsqrt.pop %v130
    %v148 = vmul.f32 %v147, %v130
    %v149 = vmul.f32 %v148, %v147
    %v150 = vmul.f32 0.5, %v149
    %v151 = vsub.f32 1.5, %v150
    %v152 = vmul.f32 %v147, %v151
    %vm153 = vweird.f32 %v130
    %vm154 = vweird.f32 %v147
    %vm155 = vmor %vm153, %vm154
    %v156 = vsel %vm155, %v147, %v152
    %v157 = vrsqrt.pop %v131
    %v158 = vmul.f32 %v157, %v131
    %v159 = vmul.f32 %v158, %v157
    %v160 = vmul.f32 0.5, %v159
    %v161 = vsub.f32 1.5, %v160
    %v162 = vmul.f32 %v157, %v161
    %vm163 = vweird.f32 %v131
    %vm164 = vweird.f32 %v157
    %vm165 = vmor %vm163, %vm164
    %v166 = vsel %vm165, %v157, %v162
    %v167 = vrsqrt.pop %v132
    %v168 = vmul.f32 %v167, %v132
    %v169 = vmul.f32 %v168, %v167
    %v170 = vmul.f32 0.5, %v169
    %v171 = vsub.f32 1.5, %v170
    %v172 = vmul.f32 %v167, %v171
    %vm173 = vweird.f32 %v132
    %vm174 = vweird.f32 %v167
    %vm175 = vmor %vm173, %vm174
    %v176 = vsel %vm175, %v167, %v172
    %v177 = vrsqrt.pop %v133
    %v178 = vmul.f32 %v177, %v133
    %v179 = vmul.f32 %v178, %v177
    %v180 = vmul.f32 0.5, %v179
    %v181 = vsub.f32 1.5, %v180
    %v182 = vmul.f32 %v177, %v181
    %vm183 = vweird.f32 %v133
    %vm184 = vweird.f32 %v177
    %vm185 = vmor %vm183, %vm184
    %v186 = vsel %vm185, %v177, %v182
    %v187 = vrsqrt.pop %v134
    %v188 = vmul.f32 %v187, %v134
    %v189 = vmul.f32 %v188, %v187
    %v190 = vmul.f32 0.5, %v189
    %v191 = vsub.f32 1.5, %v190
    %v192 = vmul.f32 %v187, %v191
    %vm193 = vweird.f32 %v134
    %vm194 = vweird.f32 %v187
    %vm195 = vmor %vm193, %vm194
    %v196 = vsel %vm195, %v187, %v192
    %v197 = vrsqrt.pop %v135
    %v198 = vmul.f32 %v197, %v135
    %v199 = vmul.f32 %v198, %v197
    %v200 = vmul.f32 0.5, %v199
    %v201 = vsub.f32 1.5, %v200
    %v202 = vmul.f32 %v197, %v201
    %vm203 = vweird.f32 %v135
    %vm204 = vweird.f32 %v197
    %vm205 = vmor %vm203, %vm204
    %v206 = vsel %vm205, %v197, %v202
    %v207 = vrsqrt.pop %v136
    %v208 = vmul.f32 %v207, %v136
    %v209 = vmul.f32 %v208, %v207
    %v210 = vmul.f32 0.5, %v209
    %v211 = vsub.f32 1.5, %v210
    %v212 = vmul.f32 %v207, %v211
    %vm213 = vweird.f32 %v136
    %vm214 = vweird.f32 %v207
    %vm215 = vmor %vm213, %vm214
    %v216 = vsel %vm215, %v207, %v212
    %v217 = vmul.f32 %v81, %v146
    %v218 = vmul.f32 %v82, %v156
    %v219 = vmul.f32 %v83, %v166
    %v220 = vmul.f32 %v84, %v176
    %v221 = vmul.f32 %v85, %v186
    %v222 = vmul.f32 %v86, %v196
    %v223 = vmul.f32 %v87, %v206
    %v224 = vmul.f32 %v88, %v216
    %v225 = vld [vmem:[%s1] sm:$0x1]
    %v227 = vperm.slane %v225, 0
    %v229 = vmul.f32 %v217, %v227
    %v230 = vmul.f32 %v218, %v227
    %v231 = vmul.f32 %v219, %v227
    %v232 = vmul.f32 %v220, %v227
    %v233 = vmul.f32 %v221, %v227
    %v234 = vmul.f32 %v222, %v227
    %v235 = vmul.f32 %v223, %v227
    %v236 = vmul.f32 %v224, %v227
    %v237 = vld [vmem:[%s2] sm:$0x1]
    %v239 = vperm.slane %v237, 0
    %v241 = vadd.f32 %v229, %v239
    %v242 = vadd.f32 %v230, %v239
    %v243 = vadd.f32 %v231, %v239
    %v244 = vadd.f32 %v232, %v239
    %v245 = vadd.f32 %v233, %v239
    %v246 = vadd.f32 %v234, %v239
    %v247 = vadd.f32 %v235, %v239
    %v248 = vadd.f32 %v236, %v239
    %v249 = vld [vmem:[%s3] sm:$0xff]
    %v250 = vld [vmem:[%s3 + $0x8] sm:$0xff]
    %v251 = vld [vmem:[%s3 + $0x10] sm:$0xff]
    %v252 = vld [vmem:[%s3 + $0x18] sm:$0xff]
    %v253 = vld [vmem:[%s3 + $0x20] sm:$0xff]
    %v254 = vld [vmem:[%s3 + $0x28] sm:$0xff]
    %v255 = vld [vmem:[%s3 + $0x30] sm:$0xff]
    %v256 = vld [vmem:[%s3 + $0x38] sm:$0xff]
    %v257 = vld [vmem:[%s4] sm:$0x3]
    %v259 = vperm.slane %v257, 0
    %v260 = vperm.slane %v257, 1
    %v264 = vsel %vm41, %v241, 0
    %v267 = vsel %vm41, %v242, 0
    %v270 = vsel %vm41, %v243, 0
    %v273 = vsel %vm41, %v244, 0
    %v276 = vsel %vm41, %v245, 0
    %v279 = vsel %vm41, %v246, 0
    %v282 = vsel %vm41, %v247, 0
    %v285 = vsel %vm41, %v248, 0
    %287 = vmatpush.msra.mxu0 0.0
    %288 = vmatpush.msra.mxu0 0.0
    %289 = vmatpush.msra.mxu0 0.0
    %290 = vmatpush.msra.mxu0 0.0
    %291 = vmatpush.msra.mxu0 0.0
    %292 = vmatpush.msra.mxu0 0.0
    %293 = vmatpush.msra.mxu0 0.0
    %294 = vmatpush.msra.mxu0 0.0
    %295 = vmatpush.msra.mxu0 0.0
    %296 = vmatpush.msra.mxu0 0.0
    %297 = vmatpush.msra.mxu0 0.0
    %298 = vmatpush.msra.mxu0 0.0
    %299 = vmatpush.msra.mxu0 %v255
    %300 = vmatpush.msra.mxu0 %v253
    %301 = vmatpush.msra.mxu0 %v251
    %302 = vmatpush.msra.mxu0 %v249
    %303 = vmatmul.f32.gmra.mxu0 %v264
    %v304 = vpop.f32.mrf.mxu0
    %v305 = vadd.f32 %v259, %v304
    %306 = vmatmul.f32.gmra.mxu0 %v267
    %v307 = vpop.f32.mrf.mxu0
    %v308 = vadd.f32 %v259, %v307
    %309 = vmatmul.f32.gmra.mxu0 %v270
    %v310 = vpop.f32.mrf.mxu0
    %v311 = vadd.f32 %v259, %v310
    %312 = vmatmul.f32.gmra.mxu0 %v273
    %v313 = vpop.f32.mrf.mxu0
    %v314 = vadd.f32 %v259, %v313
    %315 = vmatmul.f32.gmra.mxu0 %v276
    %v316 = vpop.f32.mrf.mxu0
    %v317 = vadd.f32 %v259, %v316
    %318 = vmatmul.f32.gmra.mxu0 %v279
    %v319 = vpop.f32.mrf.mxu0
    %v320 = vadd.f32 %v259, %v319
    %321 = vmatmul.f32.gmra.mxu0 %v282
    %v322 = vpop.f32.mrf.mxu0
    %v323 = vadd.f32 %v259, %v322
    %324 = vmatmul.f32.gmra.mxu0 %v285
    %v325 = vpop.f32.mrf.mxu0
    %v326 = vadd.f32 %v259, %v325
    %327 = vdwg.mxu0
    %328 = vmatpush.msra.mxu0 0.0
    %329 = vmatpush.msra.mxu0 0.0
    %330 = vmatpush.msra.mxu0 0.0
    %331 = vmatpush.msra.mxu0 0.0
    %332 = vmatpush.msra.mxu0 0.0
    %333 = vmatpush.msra.mxu0 0.0
    %334 = vmatpush.msra.mxu0 0.0
    %335 = vmatpush.msra.mxu0 0.0
    %336 = vmatpush.msra.mxu0 0.0
    %337 = vmatpush.msra.mxu0 0.0
    %338 = vmatpush.msra.mxu0 0.0
    %339 = vmatpush.msra.mxu0 0.0
    %340 = vmatpush.msra.mxu0 %v256
    %341 = vmatpush.msra.mxu0 %v254
    %342 = vmatpush.msra.mxu0 %v252
    %343 = vmatpush.msra.mxu0 %v250
    %344 = vmatmul.f32.gmra.mxu0 %v264
    %v345 = vpop.f32.mrf.mxu0
    %v346 = vadd.f32 %v260, %v345
    %347 = vmatmul.f32.gmra.mxu0 %v267
    %v348 = vpop.f32.mrf.mxu0
    %v349 = vadd.f32 %v260, %v348
    %350 = vmatmul.f32.gmra.mxu0 %v270
    %v351 = vpop.f32.mrf.mxu0
    %v352 = vadd.f32 %v260, %v351
    %353 = vmatmul.f32.gmra.mxu0 %v273
    %v354 = vpop.f32.mrf.mxu0
    %v355 = vadd.f32 %v260, %v354
    %356 = vmatmul.f32.gmra.mxu0 %v276
    %v357 = vpop.f32.mrf.mxu0
    %v358 = vadd.f32 %v260, %v357
    %359 = vmatmul.f32.gmra.mxu0 %v279
    %v360 = vpop.f32.mrf.mxu0
    %v361 = vadd.f32 %v260, %v360
    %362 = vmatmul.f32.gmra.mxu0 %v282
    %v363 = vpop.f32.mrf.mxu0
    %v364 = vadd.f32 %v260, %v363
    %365 = vmatmul.f32.gmra.mxu0 %v285
    %v366 = vpop.f32.mrf.mxu0
    %v367 = vadd.f32 %v260, %v366
    %368 = vdwg.mxu0
    %v369 = vld [vmem:[%s7] sm:$0xff]
    %v370 = vld [vmem:[%s7 + $0x8] sm:$0xff]
    %v371 = vld [vmem:[%s7 + $0x10] sm:$0xff]
    %v372 = vld [vmem:[%s7 + $0x18] sm:$0xff]
    %v373 = vld [vmem:[%s7 + $0x20] sm:$0xff]
    %v374 = vld [vmem:[%s7 + $0x28] sm:$0xff]
    %v375 = vld [vmem:[%s7 + $0x30] sm:$0xff]
    %v376 = vld [vmem:[%s7 + $0x38] sm:$0xff]
    %v377 = vld [vmem:[%s7 + $0x40] sm:$0xff]
    %v378 = vld [vmem:[%s7 + $0x48] sm:$0xff]
    %v379 = vld [vmem:[%s7 + $0x50] sm:$0xff]
    %v380 = vld [vmem:[%s7 + $0x58] sm:$0xff]
    %v381 = vld [vmem:[%s7 + $0x60] sm:$0xff]
    %v382 = vld [vmem:[%s7 + $0x68] sm:$0xff]
    %v383 = vld [vmem:[%s7 + $0x70] sm:$0xff]
    %v384 = vld [vmem:[%s7 + $0x78] sm:$0xff]
    %v385 = vld [vmem:[%s8] sm:$0xff]
    %v386 = vld [vmem:[%s8 + $0x8] sm:$0xff]
    %v387 = vld [vmem:[%s8 + $0x10] sm:$0xff]
    %v388 = vld [vmem:[%s8 + $0x18] sm:$0xff]
    %393 = vrot.lane.b32.xlu0 %v305, 96
    %v394 = vpop.permute.xlu0 %393
    %395 = vrot.lane.b32.xlu0 %v308, 96
    %v396 = vpop.permute.xlu0 %395
    %397 = vrot.lane.b32.xlu0 %v311, 96
    %v398 = vpop.permute.xlu0 %397
    %399 = vrot.lane.b32.xlu0 %v314, 96
    %v400 = vpop.permute.xlu0 %399
    %405 = vxpose.xlu0.b32.start [1/16] %v394, 128
    %406 = vxpose.xlu0.b32.cont [2/16] %v396, 128
    %407 = vxpose.xlu0.b32.cont [3/16] %v398, 128
    %408 = vxpose.xlu0.b32.cont [4/16] %v400, 128
    %409 = vxpose.xlu0.b32.cont [5/16] 0.0, 128
    %410 = vxpose.xlu0.b32.cont [6/16] 0.0, 128
    %411 = vxpose.xlu0.b32.cont [7/16] 0.0, 128
    %412 = vxpose.xlu0.b32.cont [8/16] 0.0, 128
    %413 = vxpose.xlu0.b32.cont [9/16] 0.0, 128
    %414 = vxpose.xlu0.b32.cont [10/16] 0.0, 128
    %415 = vxpose.xlu0.b32.cont [11/16] 0.0, 128
    %416 = vxpose.xlu0.b32.cont [12/16] 0.0, 128
    %417 = vxpose.xlu0.b32.cont [13/16] 0.0, 128
    %418 = vxpose.xlu0.b32.cont [14/16] 0.0, 128
    %419 = vxpose.xlu0.b32.cont [15/16] 0.0, 128
    %420 = vxpose.xlu0.b32.end [16/16] 0.0, 128
    %v421 = vpop.trf.xlu0
    %v422 = vpop.trf.xlu0
    %v423 = vpop.trf.xlu0
    %v424 = vpop.trf.xlu0
    %v425 = vpop.trf.xlu0
    %v426 = vpop.trf.xlu0
    %v427 = vpop.trf.xlu0
    %v428 = vpop.trf.xlu0
    %v429 = vpop.trf.xlu0
    %v430 = vpop.trf.xlu0
    %v431 = vpop.trf.xlu0
    %v432 = vpop.trf.xlu0
    %v433 = vpop.trf.xlu0
    %v434 = vpop.trf.xlu0
    %v435 = vpop.trf.xlu0
    %v436 = vpop.trf.xlu0
    %441 = vrot.lane.b32.xlu0 %v421, 32
    %v442 = vpop.permute.xlu0 %441
    %443 = vrot.lane.b32.xlu0 %v422, 32
    %v444 = vpop.permute.xlu0 %443
    %445 = vrot.lane.b32.xlu0 %v423, 32
    %v446 = vpop.permute.xlu0 %445
    %447 = vrot.lane.b32.xlu0 %v424, 32
    %v448 = vpop.permute.xlu0 %447
    %453 = vrot.lane.b32.xlu0 %v421, 64
    %v454 = vpop.permute.xlu0 %453
    %455 = vrot.lane.b32.xlu0 %v422, 64
    %v456 = vpop.permute.xlu0 %455
    %457 = vrot.lane.b32.xlu0 %v423, 64
    %v458 = vpop.permute.xlu0 %457
    %459 = vrot.lane.b32.xlu0 %v424, 64
    %v460 = vpop.permute.xlu0 %459
    %465 = vrot.lane.b32.xlu0 %v421, 96
    %v466 = vpop.permute.xlu0 %465
    %467 = vrot.lane.b32.xlu0 %v422, 96
    %v468 = vpop.permute.xlu0 %467
    %469 = vrot.lane.b32.xlu0 %v423, 96
    %v470 = vpop.permute.xlu0 %469
    %471 = vrot.lane.b32.xlu0 %v424, 96
    %v472 = vpop.permute.xlu0 %471
    %v477 = vsel %vm41, %v421, %v442
    %v478 = vsel %vm41, %v422, %v444
    %v479 = vsel %vm41, %v423, %v446
    %v480 = vsel %vm41, %v424, %v448
    %vm481 = vcmask 523264
    %v482 = vsel %vm481, %v477, %v454
    %v483 = vsel %vm481, %v478, %v456
    %v484 = vsel %vm481, %v479, %v458
    %v485 = vsel %vm481, %v480, %v460
    %vm486 = vcmask 785408
    %v487 = vsel %vm486, %v482, %v466
    %v488 = vsel %vm486, %v483, %v468
    %v489 = vsel %vm486, %v484, %v470
    %v490 = vsel %vm486, %v485, %v472
    %v491 = vmul.f32 %v487, %v385
    %v492 = vmul.f32 %v488, %v386
    %v493 = vmul.f32 %v489, %v387
    %v494 = vmul.f32 %v490, %v388
    %v495 = vsel %vm41, %v305, 0
    %v497 = vsel %vm41, %v308, 0
    %v499 = vsel %vm41, %v311, 0
    %v501 = vsel %vm41, %v314, 0
    %503 = vmatpush.msra.mxu0 0.0
    %504 = vmatpush.msra.mxu0 0.0
    %505 = vmatpush.msra.mxu0 0.0
    %506 = vmatpush.msra.mxu0 0.0
    %507 = vmatpush.msra.mxu0 0.0
    %508 = vmatpush.msra.mxu0 0.0
    %509 = vmatpush.msra.mxu0 0.0
    %510 = vmatpush.msra.mxu0 0.0
    %511 = vmatpush.msra.mxu0 0.0
    %512 = vmatpush.msra.mxu0 0.0
    %513 = vmatpush.msra.mxu0 0.0
    %514 = vmatpush.msra.mxu0 0.0
    %515 = vmatpush.msra.mxu0 %v494
    %516 = vmatpush.msra.mxu0 %v493
    %517 = vmatpush.msra.mxu0 %v492
    %518 = vmatpush.msra.mxu0 %v491
    %519 = vmatmul.f32.gmra.mxu0 %v495
    %v520 = vpop.f32.mrf.mxu0
    %v521 = vadd.f32 0.0, %v520
    %522 = vmatmul.f32.gmra.mxu0 %v497
    %v523 = vpop.f32.mrf.mxu0
    %v524 = vadd.f32 0.0, %v523
    %525 = vmatmul.f32.gmra.mxu0 %v499
    %v526 = vpop.f32.mrf.mxu0
    %v527 = vadd.f32 0.0, %v526
    %528 = vmatmul.f32.gmra.mxu0 %v501
    %v529 = vpop.f32.mrf.mxu0
    %v530 = vadd.f32 0.0, %v529
    %531 = vdwg.mxu0
    %v532 = vmul.f32 %v521, 0.35355338
    %v533 = vmul.f32 %v524, 0.35355338
    %v534 = vmul.f32 %v527, 0.35355338
    %v535 = vmul.f32 %v530, 0.35355338
    %536 = vmax.xlane.f32.xlu0 %v532
    %v537 = vpop.xlane.xlu0 %536
    %538 = vmax.xlane.f32.xlu0 %v533
    %v539 = vpop.xlane.xlu0 %538
    %540 = vmax.xlane.f32.xlu0 %v534
    %v541 = vpop.xlane.xlu0 %540
    %542 = vmax.xlane.f32.xlu0 %v535
    %v543 = vpop.xlane.xlu0 %542
    %v544 = vsub.f32 %v532, %v537
    %v545 = vsub.f32 %v533, %v539
    %v546 = vsub.f32 %v534, %v541
    %v547 = vsub.f32 %v535, %v543
    %v548 = vmul.f32 %v544, 1.442695
    %v549 = vpow.pop %v548
    %v550 = vmul.f32 %v545, 1.442695
    %v551 = vpow.pop %v550
    %v552 = vmul.f32 %v546, 1.442695
    %v553 = vpow.pop %v552
    %v554 = vmul.f32 %v547, 1.442695
    %v555 = vpow.pop %v554
    %572 = vrot.lane.b32.xlu0 %v369, 64
    %v573 = vpop.permute.xlu0 %572
    %574 = vrot.lane.b32.xlu0 %v370, 64
    %v575 = vpop.permute.xlu0 %574
    %576 = vrot.lane.b32.xlu0 %v371, 64
    %v577 = vpop.permute.xlu0 %576
    %578 = vrot.lane.b32.xlu0 %v372, 64
    %v579 = vpop.permute.xlu0 %578
    %580 = vrot.lane.b32.xlu0 %v373, 64
    %v581 = vpop.permute.xlu0 %580
    %582 = vrot.lane.b32.xlu0 %v374, 64
    %v583 = vpop.permute.xlu0 %582
    %584 = vrot.lane.b32.xlu0 %v375, 64
    %v585 = vpop.permute.xlu0 %584
    %586 = vrot.lane.b32.xlu0 %v376, 64
    %v587 = vpop.permute.xlu0 %586
    %588 = vrot.lane.b32.xlu0 %v377, 64
    %v589 = vpop.permute.xlu0 %588
    %590 = vrot.lane.b32.xlu0 %v378, 64
    %v591 = vpop.permute.xlu0 %590
    %592 = vrot.lane.b32.xlu0 %v379, 64
    %v593 = vpop.permute.xlu0 %592
    %594 = vrot.lane.b32.xlu0 %v380, 64
    %v595 = vpop.permute.xlu0 %594
    %596 = vrot.lane.b32.xlu0 %v381, 64
    %v597 = vpop.permute.xlu0 %596
    %598 = vrot.lane.b32.xlu0 %v382, 64
    %v599 = vpop.permute.xlu0 %598
    %600 = vrot.lane.b32.xlu0 %v383, 64
    %v601 = vpop.permute.xlu0 %600
    %602 = vrot.lane.b32.xlu0 %v384, 64
    %v603 = vpop.permute.xlu0 %602
    %v620 = vmul.f32 %v305, %v573
    %v621 = vmul.f32 %v308, %v575
    %v622 = vmul.f32 %v311, %v577
    %v623 = vmul.f32 %v314, %v579
    %v624 = vmul.f32 %v305, %v581
    %v625 = vmul.f32 %v308, %v583
    %v626 = vmul.f32 %v311, %v585
    %v627 = vmul.f32 %v314, %v587
    %v628 = vmul.f32 %v305, %v589
    %v629 = vmul.f32 %v308, %v591
    %v630 = vmul.f32 %v311, %v593
    %v631 = vmul.f32 %v314, %v595
    %v632 = vmul.f32 %v305, %v597
    %v633 = vmul.f32 %v308, %v599
    %v634 = vmul.f32 %v311, %v601
    %v635 = vmul.f32 %v314, %v603
    %652 = vrot.lane.b32.xlu0 %v620, 64
    %v653 = vpop.permute.xlu0 %652
    %654 = vrot.lane.b32.xlu0 %v621, 64
    %v655 = vpop.permute.xlu0 %654
    %656 = vrot.lane.b32.xlu0 %v622, 64
    %v657 = vpop.permute.xlu0 %656
    %658 = vrot.lane.b32.xlu0 %v623, 64
    %v659 = vpop.permute.xlu0 %658
    %660 = vrot.lane.b32.xlu0 %v624, 64
    %v661 = vpop.permute.xlu0 %660
    %662 = vrot.lane.b32.xlu0 %v625, 64
    %v663 = vpop.permute.xlu0 %662
    %664 = vrot.lane.b32.xlu0 %v626, 64
    %v665 = vpop.permute.xlu0 %664
    %666 = vrot.lane.b32.xlu0 %v627, 64
    %v667 = vpop.permute.xlu0 %666
    %668 = vrot.lane.b32.xlu0 %v628, 64
    %v669 = vpop.permute.xlu0 %668
    %670 = vrot.lane.b32.xlu0 %v629, 64
    %v671 = vpop.permute.xlu0 %670
    %672 = vrot.lane.b32.xlu0 %v630, 64
    %v673 = vpop.permute.xlu0 %672
    %674 = vrot.lane.b32.xlu0 %v631, 64
    %v675 = vpop.permute.xlu0 %674
    %676 = vrot.lane.b32.xlu0 %v632, 64
    %v677 = vpop.permute.xlu0 %676
    %678 = vrot.lane.b32.xlu0 %v633, 64
    %v679 = vpop.permute.xlu0 %678
    %680 = vrot.lane.b32.xlu0 %v634, 64
    %v681 = vpop.permute.xlu0 %680
    %682 = vrot.lane.b32.xlu0 %v635, 64
    %v683 = vpop.permute.xlu0 %682
    %700 = vmatpush.msra.mxu0 %v683
    %701 = vmatpush.msra.mxu0 %v681
    %702 = vmatpush.msra.mxu0 %v679
    %703 = vmatpush.msra.mxu0 %v677
    %704 = vmatpush.msra.mxu0 %v675
    %705 = vmatpush.msra.mxu0 %v673
    %706 = vmatpush.msra.mxu0 %v671
    %707 = vmatpush.msra.mxu0 %v669
    %708 = vmatpush.msra.mxu0 %v667
    %709 = vmatpush.msra.mxu0 %v665
    %710 = vmatpush.msra.mxu0 %v663
    %711 = vmatpush.msra.mxu0 %v661
    %712 = vmatpush.msra.mxu0 %v659
    %713 = vmatpush.msra.mxu0 %v657
    %714 = vmatpush.msra.mxu0 %v655
    %715 = vmatpush.msra.mxu0 %v653
    %716 = vmatmul.f32.gmra.mxu0 %v549
    %v717 = vpop.f32.mrf.mxu0
    %v718 = vadd.f32 0.0, %v717
    %719 = vmatmul.f32.gmra.mxu0 %v551
    %v720 = vpop.f32.mrf.mxu0
    %v721 = vadd.f32 0.0, %v720
    %722 = vmatmul.f32.gmra.mxu0 %v553
    %v723 = vpop.f32.mrf.mxu0
    %v724 = vadd.f32 0.0, %v723
    %725 = vmatmul.f32.gmra.mxu0 %v555
    %v726 = vpop.f32.mrf.mxu0
    %v727 = vadd.f32 0.0, %v726
    %728 = vdwg.mxu0
    %729 = vmatpush.msra.mxu0 %v384
    %730 = vmatpush.msra.mxu0 %v383
    %731 = vmatpush.msra.mxu0 %v382
    %732 = vmatpush.msra.mxu0 %v381
    %733 = vmatpush.msra.mxu0 %v380
    %734 = vmatpush.msra.mxu0 %v379
    %735 = vmatpush.msra.mxu0 %v378
    %736 = vmatpush.msra.mxu0 %v377
    %737 = vmatpush.msra.mxu0 %v376
    %738 = vmatpush.msra.mxu0 %v375
    %739 = vmatpush.msra.mxu0 %v374
    %740 = vmatpush.msra.mxu0 %v373
    %741 = vmatpush.msra.mxu0 %v372
    %742 = vmatpush.msra.mxu0 %v371
    %743 = vmatpush.msra.mxu0 %v370
    %744 = vmatpush.msra.mxu0 %v369
    %745 = vmatmul.f32.gmra.mxu0 %v549
    %v746 = vpop.f32.mrf.mxu0
    %v747 = vadd.f32 0.0, %v746
    %748 = vmatmul.f32.gmra.mxu0 %v551
    %v749 = vpop.f32.mrf.mxu0
    %v750 = vadd.f32 0.0, %v749
    %751 = vmatmul.f32.gmra.mxu0 %v553
    %v752 = vpop.f32.mrf.mxu0
    %v753 = vadd.f32 0.0, %v752
    %754 = vmatmul.f32.gmra.mxu0 %v555
    %v755 = vpop.f32.mrf.mxu0
    %v756 = vadd.f32 0.0, %v755
    %757 = vdwg.mxu0
    %v758 = vrcp.pop %v747
    %v759 = vmul.f32 %v747, %v758
    %v760 = vsub.f32 1.0, %v759
    %v761 = vmul.f32 %v758, %v760
    %v762 = vadd.f32 %v758, %v761
    %vm763 = vweird.f32 %v747
    %vm764 = vweird.f32 %v758
    %vm765 = vmor %vm763, %vm764
    %v766 = vsel %vm765, %v758, %v762
    %v767 = vand.u32 2147483647, %v747
    %vm768 = vcmp.eq.f32.partialorder %v767, 8.507059e+37
    %v769 = vand.u32 %v747, 2147483648
    %v770 = vor.u32 1.1754944e-38, %v769
    %v771 = vsel %vm768, %v770, %v766
    %v772 = vmul.f32 %v718, %v771
    %v773 = vrcp.pop %v750
    %v774 = vmul.f32 %v750, %v773
    %v775 = vsub.f32 1.0, %v774
    %v776 = vmul.f32 %v773, %v775
    %v777 = vadd.f32 %v773, %v776
    %vm778 = vweird.f32 %v750
    %vm779 = vweird.f32 %v773
    %vm780 = vmor %vm778, %vm779
    %v781 = vsel %vm780, %v773, %v777
    %v782 = vand.u32 2147483647, %v750
    %vm783 = vcmp.eq.f32.partialorder %v782, 8.507059e+37
    %v784 = vand.u32 %v750, 2147483648
    %v785 = vor.u32 1.1754944e-38, %v784
    %v786 = vsel %vm783, %v785, %v781
    %v787 = vmul.f32 %v721, %v786
    %v788 = vrcp.pop %v753
    %v789 = vmul.f32 %v753, %v788
    %v790 = vsub.f32 1.0, %v789
    %v791 = vmul.f32 %v788, %v790
    %v792 = vadd.f32 %v788, %v791
    %vm793 = vweird.f32 %v753
    %vm794 = vweird.f32 %v788
    %vm795 = vmor %vm793, %vm794
    %v796 = vsel %vm795, %v788, %v792
    %v797 = vand.u32 2147483647, %v753
    %vm798 = vcmp.eq.f32.partialorder %v797, 8.507059e+37
    %v799 = vand.u32 %v753, 2147483648
    %v800 = vor.u32 1.1754944e-38, %v799
    %v801 = vsel %vm798, %v800, %v796
    %v802 = vmul.f32 %v724, %v801
    %v803 = vrcp.pop %v756
    %v804 = vmul.f32 %v756, %v803
    %v805 = vsub.f32 1.0, %v804
    %v806 = vmul.f32 %v803, %v805
    %v807 = vadd.f32 %v803, %v806
    %vm808 = vweird.f32 %v756
    %vm809 = vweird.f32 %v803
    %vm810 = vmor %vm808, %vm809
    %v811 = vsel %vm810, %v803, %v807
    %v812 = vand.u32 2147483647, %v756
    %vm813 = vcmp.eq.f32.partialorder %v812, 8.507059e+37
    %v814 = vand.u32 %v756, 2147483648
    %v815 = vor.u32 1.1754944e-38, %v814
    %v816 = vsel %vm813, %v815, %v811
    %v817 = vmul.f32 %v727, %v816
    %822 = vrot.lane.b32.xlu0 %v317, 96
    %v823 = vpop.permute.xlu0 %822
    %824 = vrot.lane.b32.xlu0 %v320, 96
    %v825 = vpop.permute.xlu0 %824
    %826 = vrot.lane.b32.xlu0 %v323, 96
    %v827 = vpop.permute.xlu0 %826
    %828 = vrot.lane.b32.xlu0 %v326, 96
    %v829 = vpop.permute.xlu0 %828
    %834 = vxpose.xlu0.b32.start [1/16] %v823, 128
    %835 = vxpose.xlu0.b32.cont [2/16] %v825, 128
    %836 = vxpose.xlu0.b32.cont [3/16] %v827, 128
    %837 = vxpose.xlu0.b32.cont [4/16] %v829, 128
    %838 = vxpose.xlu0.b32.cont [5/16] 0.0, 128
    %839 = vxpose.xlu0.b32.cont [6/16] 0.0, 128
    %840 = vxpose.xlu0.b32.cont [7/16] 0.0, 128
    %841 = vxpose.xlu0.b32.cont [8/16] 0.0, 128
    %842 = vxpose.xlu0.b32.cont [9/16] 0.0, 128
    %843 = vxpose.xlu0.b32.cont [10/16] 0.0, 128
    %844 = vxpose.xlu0.b32.cont [11/16] 0.0, 128
    %845 = vxpose.xlu0.b32.cont [12/16] 0.0, 128
    %846 = vxpose.xlu0.b32.cont [13/16] 0.0, 128
    %847 = vxpose.xlu0.b32.cont [14/16] 0.0, 128
    %848 = vxpose.xlu0.b32.cont [15/16] 0.0, 128
    %849 = vxpose.xlu0.b32.end [16/16] 0.0, 128
    %v850 = vpop.trf.xlu0
    %v851 = vpop.trf.xlu0
    %v852 = vpop.trf.xlu0
    %v853 = vpop.trf.xlu0
    %v854 = vpop.trf.xlu0
    %v855 = vpop.trf.xlu0
    %v856 = vpop.trf.xlu0
    %v857 = vpop.trf.xlu0
    %v858 = vpop.trf.xlu0
    %v859 = vpop.trf.xlu0
    %v860 = vpop.trf.xlu0
    %v861 = vpop.trf.xlu0
    %v862 = vpop.trf.xlu0
    %v863 = vpop.trf.xlu0
    %v864 = vpop.trf.xlu0
    %v865 = vpop.trf.xlu0
    %870 = vrot.lane.b32.xlu0 %v850, 32
    %v871 = vpop.permute.xlu0 %870
    %872 = vrot.lane.b32.xlu0 %v851, 32
    %v873 = vpop.permute.xlu0 %872
    %874 = vrot.lane.b32.xlu0 %v852, 32
    %v875 = vpop.permute.xlu0 %874
    %876 = vrot.lane.b32.xlu0 %v853, 32
    %v877 = vpop.permute.xlu0 %876
    %882 = vrot.lane.b32.xlu0 %v850, 64
    %v883 = vpop.permute.xlu0 %882
    %884 = vrot.lane.b32.xlu0 %v851, 64
    %v885 = vpop.permute.xlu0 %884
    %886 = vrot.lane.b32.xlu0 %v852, 64
    %v887 = vpop.permute.xlu0 %886
    %888 = vrot.lane.b32.xlu0 %v853, 64
    %v889 = vpop.permute.xlu0 %888
    %894 = vrot.lane.b32.xlu0 %v850, 96
    %v895 = vpop.permute.xlu0 %894
    %896 = vrot.lane.b32.xlu0 %v851, 96
    %v897 = vpop.permute.xlu0 %896
    %898 = vrot.lane.b32.xlu0 %v852, 96
    %v899 = vpop.permute.xlu0 %898
    %900 = vrot.lane.b32.xlu0 %v853, 96
    %v901 = vpop.permute.xlu0 %900
    %v906 = vsel %vm41, %v850, %v871
    %v907 = vsel %vm41, %v851, %v873
    %v908 = vsel %vm41, %v852, %v875
    %v909 = vsel %vm41, %v853, %v877
    %v910 = vsel %vm481, %v906, %v883
    %v911 = vsel %vm481, %v907, %v885
    %v912 = vsel %vm481, %v908, %v887
    %v913 = vsel %vm481, %v909, %v889
    %v914 = vsel %vm486, %v910, %v895
    %v915 = vsel %vm486, %v911, %v897
    %v916 = vsel %vm486, %v912, %v899
    %v917 = vsel %vm486, %v913, %v901
    %v918 = vmul.f32 %v914, %v385
    %v919 = vmul.f32 %v915, %v386
    %v920 = vmul.f32 %v916, %v387
    %v921 = vmul.f32 %v917, %v388
    %v922 = vsel %vm41, %v317, 0
    %v924 = vsel %vm41, %v320, 0
    %v926 = vsel %vm41, %v323, 0
    %v928 = vsel %vm41, %v326, 0
    %930 = vmatpush.msra.mxu0 0.0
    %931 = vmatpush.msra.mxu0 0.0
    %932 = vmatpush.msra.mxu0 0.0
    %933 = vmatpush.msra.mxu0 0.0
    %934 = vmatpush.msra.mxu0 0.0
    %935 = vmatpush.msra.mxu0 0.0
    %936 = vmatpush.msra.mxu0 0.0
    %937 = vmatpush.msra.mxu0 0.0
    %938 = vmatpush.msra.mxu0 0.0
    %939 = vmatpush.msra.mxu0 0.0
    %940 = vmatpush.msra.mxu0 0.0
    %941 = vmatpush.msra.mxu0 0.0
    %942 = vmatpush.msra.mxu0 %v921
    %943 = vmatpush.msra.mxu0 %v920
    %944 = vmatpush.msra.mxu0 %v919
    %945 = vmatpush.msra.mxu0 %v918
    %946 = vmatmul.f32.gmra.mxu0 %v922
    %v947 = vpop.f32.mrf.mxu0
    %v948 = vadd.f32 0.0, %v947
    %949 = vmatmul.f32.gmra.mxu0 %v924
    %v950 = vpop.f32.mrf.mxu0
    %v951 = vadd.f32 0.0, %v950
    %952 = vmatmul.f32.gmra.mxu0 %v926
    %v953 = vpop.f32.mrf.mxu0
    %v954 = vadd.f32 0.0, %v953
    %955 = vmatmul.f32.gmra.mxu0 %v928
    %v956 = vpop.f32.mrf.mxu0
    %v957 = vadd.f32 0.0, %v956
    %958 = vdwg.mxu0
    %v959 = vmul.f32 %v948, 0.35355338
    %v960 = vmul.f32 %v951, 0.35355338
    %v961 = vmul.f32 %v954, 0.35355338
    %v962 = vmul.f32 %v957, 0.35355338
    %963 = vmax.xlane.f32.xlu0 %v959
    %v964 = vpop.xlane.xlu0 %963
    %965 = vmax.xlane.f32.xlu0 %v960
    %v966 = vpop.xlane.xlu0 %965
    %967 = vmax.xlane.f32.xlu0 %v961
    %v968 = vpop.xlane.xlu0 %967
    %969 = vmax.xlane.f32.xlu0 %v962
    %v970 = vpop.xlane.xlu0 %969
    %v971 = vsub.f32 %v959, %v964
    %v972 = vsub.f32 %v960, %v966
    %v973 = vsub.f32 %v961, %v968
    %v974 = vsub.f32 %v962, %v970
    %v975 = vmul.f32 %v971, 1.442695
    %v976 = vpow.pop %v975
    %v977 = vmul.f32 %v972, 1.442695
    %v978 = vpow.pop %v977
    %v979 = vmul.f32 %v973, 1.442695
    %v980 = vpow.pop %v979
    %v981 = vmul.f32 %v974, 1.442695
    %v982 = vpow.pop %v981
    %v983 = vmul.f32 %v317, %v573
    %v984 = vmul.f32 %v320, %v575
    %v985 = vmul.f32 %v323, %v577
    %v986 = vmul.f32 %v326, %v579
    %v987 = vmul.f32 %v317, %v581
    %v988 = vmul.f32 %v320, %v583
    %v989 = vmul.f32 %v323, %v585
    %v990 = vmul.f32 %v326, %v587
    %v991 = vmul.f32 %v317, %v589
    %v992 = vmul.f32 %v320, %v591
    %v993 = vmul.f32 %v323, %v593
    %v994 = vmul.f32 %v326, %v595
    %v995 = vmul.f32 %v317, %v597
    %v996 = vmul.f32 %v320, %v599
    %v997 = vmul.f32 %v323, %v601
    %v998 = vmul.f32 %v326, %v603
    %1015 = vrot.lane.b32.xlu0 %v983, 64
    %v1016 = vpop.permute.xlu0 %1015
    %1017 = vrot.lane.b32.xlu0 %v984, 64
    %v1018 = vpop.permute.xlu0 %1017
    %1019 = vrot.lane.b32.xlu0 %v985, 64
    %v1020 = vpop.permute.xlu0 %1019
    %1021 = vrot.lane.b32.xlu0 %v986, 64
    %v1022 = vpop.permute.xlu0 %1021
    %1023 = vrot.lane.b32.xlu0 %v987, 64
    %v1024 = vpop.permute.xlu0 %1023
    %1025 = vrot.lane.b32.xlu0 %v988, 64
    %v1026 = vpop.permute.xlu0 %1025
    %1027 = vrot.lane.b32.xlu0 %v989, 64
    %v1028 = vpop.permute.xlu0 %1027
    %1029 = vrot.lane.b32.xlu0 %v990, 64
    %v1030 = vpop.permute.xlu0 %1029
    %1031 = vrot.lane.b32.xlu0 %v991, 64
    %v1032 = vpop.permute.xlu0 %1031
    %1033 = vrot.lane.b32.xlu0 %v992, 64
    %v1034 = vpop.permute.xlu0 %1033
    %1035 = vrot.lane.b32.xlu0 %v993, 64
    %v1036 = vpop.permute.xlu0 %1035
    %1037 = vrot.lane.b32.xlu0 %v994, 64
    %v1038 = vpop.permute.xlu0 %1037
    %1039 = vrot.lane.b32.xlu0 %v995, 64
    %v1040 = vpop.permute.xlu0 %1039
    %1041 = vrot.lane.b32.xlu0 %v996, 64
    %v1042 = vpop.permute.xlu0 %1041
    %1043 = vrot.lane.b32.xlu0 %v997, 64
    %v1044 = vpop.permute.xlu0 %1043
    %1045 = vrot.lane.b32.xlu0 %v998, 64
    %v1046 = vpop.permute.xlu0 %1045
    %1063 = vmatpush.msra.mxu0 %v1046
    %1064 = vmatpush.msra.mxu0 %v1044
    %1065 = vmatpush.msra.mxu0 %v1042
    %1066 = vmatpush.msra.mxu0 %v1040
    %1067 = vmatpush.msra.mxu0 %v1038
    %1068 = vmatpush.msra.mxu0 %v1036
    %1069 = vmatpush.msra.mxu0 %v1034
    %1070 = vmatpush.msra.mxu0 %v1032
    %1071 = vmatpush.msra.mxu0 %v1030
    %1072 = vmatpush.msra.mxu0 %v1028
    %1073 = vmatpush.msra.mxu0 %v1026
    %1074 = vmatpush.msra.mxu0 %v1024
    %1075 = vmatpush.msra.mxu0 %v1022
    %1076 = vmatpush.msra.mxu0 %v1020
    %1077 = vmatpush.msra.mxu0 %v1018
    %1078 = vmatpush.msra.mxu0 %v1016
    %1079 = vmatmul.f32.gmra.mxu0 %v976
    %v1080 = vpop.f32.mrf.mxu0
    %v1081 = vadd.f32 0.0, %v1080
    %1082 = vmatmul.f32.gmra.mxu0 %v978
    %v1083 = vpop.f32.mrf.mxu0
    %v1084 = vadd.f32 0.0, %v1083
    %1085 = vmatmul.f32.gmra.mxu0 %v980
    %v1086 = vpop.f32.mrf.mxu0
    %v1087 = vadd.f32 0.0, %v1086
    %1088 = vmatmul.f32.gmra.mxu0 %v982
    %v1089 = vpop.f32.mrf.mxu0
    %v1090 = vadd.f32 0.0, %v1089
    %1091 = vdwg.mxu0
    %1092 = vmatpush.msra.mxu0 %v384
    %1093 = vmatpush.msra.mxu0 %v383
    %1094 = vmatpush.msra.mxu0 %v382
    %1095 = vmatpush.msra.mxu0 %v381
    %1096 = vmatpush.msra.mxu0 %v380
    %1097 = vmatpush.msra.mxu0 %v379
    %1098 = vmatpush.msra.mxu0 %v378
    %1099 = vmatpush.msra.mxu0 %v377
    %1100 = vmatpush.msra.mxu0 %v376
    %1101 = vmatpush.msra.mxu0 %v375
    %1102 = vmatpush.msra.mxu0 %v374
    %1103 = vmatpush.msra.mxu0 %v373
    %1104 = vmatpush.msra.mxu0 %v372
    %1105 = vmatpush.msra.mxu0 %v371
    %1106 = vmatpush.msra.mxu0 %v370
    %1107 = vmatpush.msra.mxu0 %v369
    %1108 = vmatmul.f32.gmra.mxu0 %v976
    %v1109 = vpop.f32.mrf.mxu0
    %v1110 = vadd.f32 0.0, %v1109
    %1111 = vmatmul.f32.gmra.mxu0 %v978
    %v1112 = vpop.f32.mrf.mxu0
    %v1113 = vadd.f32 0.0, %v1112
    %1114 = vmatmul.f32.gmra.mxu0 %v980
    %v1115 = vpop.f32.mrf.mxu0
    %v1116 = vadd.f32 0.0, %v1115
    %1117 = vmatmul.f32.gmra.mxu0 %v982
    %v1118 = vpop.f32.mrf.mxu0
    %v1119 = vadd.f32 0.0, %v1118
    %1120 = vdwg.mxu0
    %v1121 = vrcp.pop %v1110
    %v1122 = vmul.f32 %v1110, %v1121
    %v1123 = vsub.f32 1.0, %v1122
    %v1124 = vmul.f32 %v1121, %v1123
    %v1125 = vadd.f32 %v1121, %v1124
    %vm1126 = vweird.f32 %v1110
    %vm1127 = vweird.f32 %v1121
    %vm1128 = vmor %vm1126, %vm1127
    %v1129 = vsel %vm1128, %v1121, %v1125
    %v1130 = vand.u32 2147483647, %v1110
    %vm1131 = vcmp.eq.f32.partialorder %v1130, 8.507059e+37
    %v1132 = vand.u32 %v1110, 2147483648
    %v1133 = vor.u32 1.1754944e-38, %v1132
    %v1134 = vsel %vm1131, %v1133, %v1129
    %v1135 = vmul.f32 %v1081, %v1134
    %v1136 = vrcp.pop %v1113
    %v1137 = vmul.f32 %v1113, %v1136
    %v1138 = vsub.f32 1.0, %v1137
    %v1139 = vmul.f32 %v1136, %v1138
    %v1140 = vadd.f32 %v1136, %v1139
    %vm1141 = vweird.f32 %v1113
    %vm1142 = vweird.f32 %v1136
    %vm1143 = vmor %vm1141, %vm1142
    %v1144 = vsel %vm1143, %v1136, %v1140
    %v1145 = vand.u32 2147483647, %v1113
    %vm1146 = vcmp.eq.f32.partialorder %v1145, 8.507059e+37
    %v1147 = vand.u32 %v1113, 2147483648
    %v1148 = vor.u32 1.1754944e-38, %v1147
    %v1149 = vsel %vm1146, %v1148, %v1144
    %v1150 = vmul.f32 %v1084, %v1149
    %v1151 = vrcp.pop %v1116
    %v1152 = vmul.f32 %v1116, %v1151
    %v1153 = vsub.f32 1.0, %v1152
    %v1154 = vmul.f32 %v1151, %v1153
    %v1155 = vadd.f32 %v1151, %v1154
    %vm1156 = vweird.f32 %v1116
    %vm1157 = vweird.f32 %v1151
    %vm1158 = vmor %vm1156, %vm1157
    %v1159 = vsel %vm1158, %v1151, %v1155
    %v1160 = vand.u32 2147483647, %v1116
    %vm1161 = vcmp.eq.f32.partialorder %v1160, 8.507059e+37
    %v1162 = vand.u32 %v1116, 2147483648
    %v1163 = vor.u32 1.1754944e-38, %v1162
    %v1164 = vsel %vm1161, %v1163, %v1159
    %v1165 = vmul.f32 %v1087, %v1164
    %v1166 = vrcp.pop %v1119
    %v1167 = vmul.f32 %v1119, %v1166
    %v1168 = vsub.f32 1.0, %v1167
    %v1169 = vmul.f32 %v1166, %v1168
    %v1170 = vadd.f32 %v1166, %v1169
    %vm1171 = vweird.f32 %v1119
    %vm1172 = vweird.f32 %v1166
    %vm1173 = vmor %vm1171, %vm1172
    %v1174 = vsel %vm1173, %v1166, %v1170
    %v1175 = vand.u32 2147483647, %v1119
    %vm1176 = vcmp.eq.f32.partialorder %v1175, 8.507059e+37
    %v1177 = vand.u32 %v1119, 2147483648
    %v1178 = vor.u32 1.1754944e-38, %v1177
    %v1179 = vsel %vm1176, %v1178, %v1174
    %v1180 = vmul.f32 %v1090, %v1179
    %1181 = vxpose.xlu0.b32.start [1/16] %v346, 128
    %1182 = vxpose.xlu0.b32.cont [2/16] %v349, 128
    %1183 = vxpose.xlu0.b32.cont [3/16] %v352, 128
    %1184 = vxpose.xlu0.b32.cont [4/16] %v355, 128
    %1185 = vxpose.xlu0.b32.cont [5/16] 0.0, 128
    %1186 = vxpose.xlu0.b32.cont [6/16] 0.0, 128
    %1187 = vxpose.xlu0.b32.cont [7/16] 0.0, 128
    %1188 = vxpose.xlu0.b32.cont [8/16] 0.0, 128
    %1189 = vxpose.xlu0.b32.cont [9/16] 0.0, 128
    %1190 = vxpose.xlu0.b32.cont [10/16] 0.0, 128
    %1191 = vxpose.xlu0.b32.cont [11/16] 0.0, 128
    %1192 = vxpose.xlu0.b32.cont [12/16] 0.0, 128
    %1193 = vxpose.xlu0.b32.cont [13/16] 0.0, 128
    %1194 = vxpose.xlu0.b32.cont [14/16] 0.0, 128
    %1195 = vxpose.xlu0.b32.cont [15/16] 0.0, 128
    %1196 = vxpose.xlu0.b32.end [16/16] 0.0, 128
    %v1197 = vpop.trf.xlu0
    %v1198 = vpop.trf.xlu0
    %v1199 = vpop.trf.xlu0
    %v1200 = vpop.trf.xlu0
    %v1201 = vpop.trf.xlu0
    %v1202 = vpop.trf.xlu0
    %v1203 = vpop.trf.xlu0
    %v1204 = vpop.trf.xlu0
    %v1205 = vpop.trf.xlu0
    %v1206 = vpop.trf.xlu0
    %v1207 = vpop.trf.xlu0
    %v1208 = vpop.trf.xlu0
    %v1209 = vpop.trf.xlu0
    %v1210 = vpop.trf.xlu0
    %v1211 = vpop.trf.xlu0
    %v1212 = vpop.trf.xlu0
    %1217 = vrot.lane.b32.xlu0 %v1197, 32
    %v1218 = vpop.permute.xlu0 %1217
    %1219 = vrot.lane.b32.xlu0 %v1198, 32
    %v1220 = vpop.permute.xlu0 %1219
    %1221 = vrot.lane.b32.xlu0 %v1199, 32
    %v1222 = vpop.permute.xlu0 %1221
    %1223 = vrot.lane.b32.xlu0 %v1200, 32
    %v1224 = vpop.permute.xlu0 %1223
    %1229 = vrot.lane.b32.xlu0 %v1197, 64
    %v1230 = vpop.permute.xlu0 %1229
    %1231 = vrot.lane.b32.xlu0 %v1198, 64
    %v1232 = vpop.permute.xlu0 %1231
    %1233 = vrot.lane.b32.xlu0 %v1199, 64
    %v1234 = vpop.permute.xlu0 %1233
    %1235 = vrot.lane.b32.xlu0 %v1200, 64
    %v1236 = vpop.permute.xlu0 %1235
    %1241 = vrot.lane.b32.xlu0 %v1197, 96
    %v1242 = vpop.permute.xlu0 %1241
    %1243 = vrot.lane.b32.xlu0 %v1198, 96
    %v1244 = vpop.permute.xlu0 %1243
    %1245 = vrot.lane.b32.xlu0 %v1199, 96
    %v1246 = vpop.permute.xlu0 %1245
    %1247 = vrot.lane.b32.xlu0 %v1200, 96
    %v1248 = vpop.permute.xlu0 %1247
    %v1253 = vsel %vm41, %v1197, %v1218
    %v1254 = vsel %vm41, %v1198, %v1220
    %v1255 = vsel %vm41, %v1199, %v1222
    %v1256 = vsel %vm41, %v1200, %v1224
    %v1257 = vsel %vm481, %v1253, %v1230
    %v1258 = vsel %vm481, %v1254, %v1232
    %v1259 = vsel %vm481, %v1255, %v1234
    %v1260 = vsel %vm481, %v1256, %v1236
    %v1261 = vsel %vm486, %v1257, %v1242
    %v1262 = vsel %vm486, %v1258, %v1244
    %v1263 = vsel %vm486, %v1259, %v1246
    %v1264 = vsel %vm486, %v1260, %v1248
    %v1265 = vmul.f32 %v1261, %v385
    %v1266 = vmul.f32 %v1262, %v386
    %v1267 = vmul.f32 %v1263, %v387
    %v1268 = vmul.f32 %v1264, %v388
    %1269 = vrot.lane.b32.xlu0 %v305, 32
    %v1270 = vpop.permute.xlu0 %1269
    %1271 = vrot.lane.b32.xlu0 %v308, 32
    %v1272 = vpop.permute.xlu0 %1271
    %1273 = vrot.lane.b32.xlu0 %v311, 32
    %v1274 = vpop.permute.xlu0 %1273
    %1275 = vrot.lane.b32.xlu0 %v314, 32
    %v1276 = vpop.permute.xlu0 %1275
    %v1277 = vsel %vm41, %v1270, 0
    %v1279 = vsel %vm41, %v1272, 0
    %v1281 = vsel %vm41, %v1274, 0
    %v1283 = vsel %vm41, %v1276, 0
    %1285 = vmatpush.msra.mxu0 0.0
    %1286 = vmatpush.msra.mxu0 0.0
    %1287 = vmatpush.msra.mxu0 0.0
    %1288 = vmatpush.msra.mxu0 0.0
    %1289 = vmatpush.msra.mxu0 0.0
    %1290 = vmatpush.msra.mxu0 0.0
    %1291 = vmatpush.msra.mxu0 0.0
    %1292 = vmatpush.msra.mxu0 0.0
    %1293 = vmatpush.msra.mxu0 0.0
    %1294 = vmatpush.msra.mxu0 0.0
    %1295 = vmatpush.msra.mxu0 0.0
    %1296 = vmatpush.msra.mxu0 0.0
    %1297 = vmatpush.msra.mxu0 %v1268
    %1298 = vmatpush.msra.mxu0 %v1267
    %1299 = vmatpush.msra.mxu0 %v1266
    %1300 = vmatpush.msra.mxu0 %v1265
    %1301 = vmatmul.f32.gmra.mxu0 %v1277
    %v1302 = vpop.f32.mrf.mxu0
    %v1303 = vadd.f32 0.0, %v1302
    %1304 = vmatmul.f32.gmra.mxu0 %v1279
    %v1305 = vpop.f32.mrf.mxu0
    %v1306 = vadd.f32 0.0, %v1305
    %1307 = vmatmul.f32.gmra.mxu0 %v1281
    %v1308 = vpop.f32.mrf.mxu0
    %v1309 = vadd.f32 0.0, %v1308
    %1310 = vmatmul.f32.gmra.mxu0 %v1283
    %v1311 = vpop.f32.mrf.mxu0
    %v1312 = vadd.f32 0.0, %v1311
    %1313 = vdwg.mxu0
    %v1314 = vmul.f32 %v1303, 0.35355338
    %v1315 = vmul.f32 %v1306, 0.35355338
    %v1316 = vmul.f32 %v1309, 0.35355338
    %v1317 = vmul.f32 %v1312, 0.35355338
    %1318 = vmax.xlane.f32.xlu0 %v1314
    %v1319 = vpop.xlane.xlu0 %1318
    %1320 = vmax.xlane.f32.xlu0 %v1315
    %v1321 = vpop.xlane.xlu0 %1320
    %1322 = vmax.xlane.f32.xlu0 %v1316
    %v1323 = vpop.xlane.xlu0 %1322
    %1324 = vmax.xlane.f32.xlu0 %v1317
    %v1325 = vpop.xlane.xlu0 %1324
    %v1326 = vsub.f32 %v1314, %v1319
    %v1327 = vsub.f32 %v1315, %v1321
    %v1328 = vsub.f32 %v1316, %v1323
    %v1329 = vsub.f32 %v1317, %v1325
    %v1330 = vmul.f32 %v1326, 1.442695
    %v1331 = vpow.pop %v1330
    %v1332 = vmul.f32 %v1327, 1.442695
    %v1333 = vpow.pop %v1332
    %v1334 = vmul.f32 %v1328, 1.442695
    %v1335 = vpow.pop %v1334
    %v1336 = vmul.f32 %v1329, 1.442695
    %v1337 = vpow.pop %v1336
    %1338 = vrot.lane.b32.xlu0 %v369, 32
    %v1339 = vpop.permute.xlu0 %1338
    %1340 = vrot.lane.b32.xlu0 %v370, 32
    %v1341 = vpop.permute.xlu0 %1340
    %1342 = vrot.lane.b32.xlu0 %v371, 32
    %v1343 = vpop.permute.xlu0 %1342
    %1344 = vrot.lane.b32.xlu0 %v372, 32
    %v1345 = vpop.permute.xlu0 %1344
    %1346 = vrot.lane.b32.xlu0 %v373, 32
    %v1347 = vpop.permute.xlu0 %1346
    %1348 = vrot.lane.b32.xlu0 %v374, 32
    %v1349 = vpop.permute.xlu0 %1348
    %1350 = vrot.lane.b32.xlu0 %v375, 32
    %v1351 = vpop.permute.xlu0 %1350
    %1352 = vrot.lane.b32.xlu0 %v376, 32
    %v1353 = vpop.permute.xlu0 %1352
    %1354 = vrot.lane.b32.xlu0 %v377, 32
    %v1355 = vpop.permute.xlu0 %1354
    %1356 = vrot.lane.b32.xlu0 %v378, 32
    %v1357 = vpop.permute.xlu0 %1356
    %1358 = vrot.lane.b32.xlu0 %v379, 32
    %v1359 = vpop.permute.xlu0 %1358
    %1360 = vrot.lane.b32.xlu0 %v380, 32
    %v1361 = vpop.permute.xlu0 %1360
    %1362 = vrot.lane.b32.xlu0 %v381, 32
    %v1363 = vpop.permute.xlu0 %1362
    %1364 = vrot.lane.b32.xlu0 %v382, 32
    %v1365 = vpop.permute.xlu0 %1364
    %1366 = vrot.lane.b32.xlu0 %v383, 32
    %v1367 = vpop.permute.xlu0 %1366
    %1368 = vrot.lane.b32.xlu0 %v384, 32
    %v1369 = vpop.permute.xlu0 %1368
    %v1386 = vmul.f32 %v346, %v1339
    %v1387 = vmul.f32 %v349, %v1341
    %v1388 = vmul.f32 %v352, %v1343
    %v1389 = vmul.f32 %v355, %v1345
    %v1390 = vmul.f32 %v346, %v1347
    %v1391 = vmul.f32 %v349, %v1349
    %v1392 = vmul.f32 %v352, %v1351
    %v1393 = vmul.f32 %v355, %v1353
    %v1394 = vmul.f32 %v346, %v1355
    %v1395 = vmul.f32 %v349, %v1357
    %v1396 = vmul.f32 %v352, %v1359
    %v1397 = vmul.f32 %v355, %v1361
    %v1398 = vmul.f32 %v346, %v1363
    %v1399 = vmul.f32 %v349, %v1365
    %v1400 = vmul.f32 %v352, %v1367
    %v1401 = vmul.f32 %v355, %v1369
    %1418 = vrot.lane.b32.xlu0 %v1386, 96
    %v1419 = vpop.permute.xlu0 %1418
    %1420 = vrot.lane.b32.xlu0 %v1387, 96
    %v1421 = vpop.permute.xlu0 %1420
    %1422 = vrot.lane.b32.xlu0 %v1388, 96
    %v1423 = vpop.permute.xlu0 %1422
    %1424 = vrot.lane.b32.xlu0 %v1389, 96
    %v1425 = vpop.permute.xlu0 %1424
    %1426 = vrot.lane.b32.xlu0 %v1390, 96
    %v1427 = vpop.permute.xlu0 %1426
    %1428 = vrot.lane.b32.xlu0 %v1391, 96
    %v1429 = vpop.permute.xlu0 %1428
    %1430 = vrot.lane.b32.xlu0 %v1392, 96
    %v1431 = vpop.permute.xlu0 %1430
    %1432 = vrot.lane.b32.xlu0 %v1393, 96
    %v1433 = vpop.permute.xlu0 %1432
    %1434 = vrot.lane.b32.xlu0 %v1394, 96
    %v1435 = vpop.permute.xlu0 %1434
    %1436 = vrot.lane.b32.xlu0 %v1395, 96
    %v1437 = vpop.permute.xlu0 %1436
    %1438 = vrot.lane.b32.xlu0 %v1396, 96
    %v1439 = vpop.permute.xlu0 %1438
    %1440 = vrot.lane.b32.xlu0 %v1397, 96
    %v1441 = vpop.permute.xlu0 %1440
    %1442 = vrot.lane.b32.xlu0 %v1398, 96
    %v1443 = vpop.permute.xlu0 %1442
    %1444 = vrot.lane.b32.xlu0 %v1399, 96
    %v1445 = vpop.permute.xlu0 %1444
    %1446 = vrot.lane.b32.xlu0 %v1400, 96
    %v1447 = vpop.permute.xlu0 %1446
    %1448 = vrot.lane.b32.xlu0 %v1401, 96
    %v1449 = vpop.permute.xlu0 %1448
    %1466 = vmatpush.msra.mxu0 %v1449
    %1467 = vmatpush.msra.mxu0 %v1447
    %1468 = vmatpush.msra.mxu0 %v1445
    %1469 = vmatpush.msra.mxu0 %v1443
    %1470 = vmatpush.msra.mxu0 %v1441
    %1471 = vmatpush.msra.mxu0 %v1439
    %1472 = vmatpush.msra.mxu0 %v1437
    %1473 = vmatpush.msra.mxu0 %v1435
    %1474 = vmatpush.msra.mxu0 %v1433
    %1475 = vmatpush.msra.mxu0 %v1431
    %1476 = vmatpush.msra.mxu0 %v1429
    %1477 = vmatpush.msra.mxu0 %v1427
    %1478 = vmatpush.msra.mxu0 %v1425
    %1479 = vmatpush.msra.mxu0 %v1423
    %1480 = vmatpush.msra.mxu0 %v1421
    %1481 = vmatpush.msra.mxu0 %v1419
    %1482 = vmatmul.f32.gmra.mxu0 %v1331
    %v1483 = vpop.f32.mrf.mxu0
    %v1484 = vadd.f32 0.0, %v1483
    %1485 = vmatmul.f32.gmra.mxu0 %v1333
    %v1486 = vpop.f32.mrf.mxu0
    %v1487 = vadd.f32 0.0, %v1486
    %1488 = vmatmul.f32.gmra.mxu0 %v1335
    %v1489 = vpop.f32.mrf.mxu0
    %v1490 = vadd.f32 0.0, %v1489
    %1491 = vmatmul.f32.gmra.mxu0 %v1337
    %v1492 = vpop.f32.mrf.mxu0
    %v1493 = vadd.f32 0.0, %v1492
    %1494 = vdwg.mxu0
    %1495 = vmatpush.msra.mxu0 %v384
    %1496 = vmatpush.msra.mxu0 %v383
    %1497 = vmatpush.msra.mxu0 %v382
    %1498 = vmatpush.msra.mxu0 %v381
    %1499 = vmatpush.msra.mxu0 %v380
    %1500 = vmatpush.msra.mxu0 %v379
    %1501 = vmatpush.msra.mxu0 %v378
    %1502 = vmatpush.msra.mxu0 %v377
    %1503 = vmatpush.msra.mxu0 %v376
    %1504 = vmatpush.msra.mxu0 %v375
    %1505 = vmatpush.msra.mxu0 %v374
    %1506 = vmatpush.msra.mxu0 %v373
    %1507 = vmatpush.msra.mxu0 %v372
    %1508 = vmatpush.msra.mxu0 %v371
    %1509 = vmatpush.msra.mxu0 %v370
    %1510 = vmatpush.msra.mxu0 %v369
    %1511 = vmatmul.f32.gmra.mxu0 %v1331
    %v1512 = vpop.f32.mrf.mxu0
    %v1513 = vadd.f32 0.0, %v1512
    %1514 = vmatmul.f32.gmra.mxu0 %v1333
    %v1515 = vpop.f32.mrf.mxu0
    %v1516 = vadd.f32 0.0, %v1515
    %1517 = vmatmul.f32.gmra.mxu0 %v1335
    %v1518 = vpop.f32.mrf.mxu0
    %v1519 = vadd.f32 0.0, %v1518
    %1520 = vmatmul.f32.gmra.mxu0 %v1337
    %v1521 = vpop.f32.mrf.mxu0
    %v1522 = vadd.f32 0.0, %v1521
    %1523 = vdwg.mxu0
    %v1524 = vrcp.pop %v1513
    %v1525 = vmul.f32 %v1513, %v1524
    %v1526 = vsub.f32 1.0, %v1525
    %v1527 = vmul.f32 %v1524, %v1526
    %v1528 = vadd.f32 %v1524, %v1527
    %vm1529 = vweird.f32 %v1513
    %vm1530 = vweird.f32 %v1524
    %vm1531 = vmor %vm1529, %vm1530
    %v1532 = vsel %vm1531, %v1524, %v1528
    %v1533 = vand.u32 2147483647, %v1513
    %vm1534 = vcmp.eq.f32.partialorder %v1533, 8.507059e+37
    %v1535 = vand.u32 %v1513, 2147483648
    %v1536 = vor.u32 1.1754944e-38, %v1535
    %v1537 = vsel %vm1534, %v1536, %v1532
    %v1538 = vmul.f32 %v1484, %v1537
    %v1539 = vrcp.pop %v1516
    %v1540 = vmul.f32 %v1516, %v1539
    %v1541 = vsub.f32 1.0, %v1540
    %v1542 = vmul.f32 %v1539, %v1541
    %v1543 = vadd.f32 %v1539, %v1542
    %vm1544 = vweird.f32 %v1516
    %vm1545 = vweird.f32 %v1539
    %vm1546 = vmor %vm1544, %vm1545
    %v1547 = vsel %vm1546, %v1539, %v1543
    %v1548 = vand.u32 2147483647, %v1516
    %vm1549 = vcmp.eq.f32.partialorder %v1548, 8.507059e+37
    %v1550 = vand.u32 %v1516, 2147483648
    %v1551 = vor.u32 1.1754944e-38, %v1550
    %v1552 = vsel %vm1549, %v1551, %v1547
    %v1553 = vmul.f32 %v1487, %v1552
    %v1554 = vrcp.pop %v1519
    %v1555 = vmul.f32 %v1519, %v1554
    %v1556 = vsub.f32 1.0, %v1555
    %v1557 = vmul.f32 %v1554, %v1556
    %v1558 = vadd.f32 %v1554, %v1557
    %vm1559 = vweird.f32 %v1519
    %vm1560 = vweird.f32 %v1554
    %vm1561 = vmor %vm1559, %vm1560
    %v1562 = vsel %vm1561, %v1554, %v1558
    %v1563 = vand.u32 2147483647, %v1519
    %vm1564 = vcmp.eq.f32.partialorder %v1563, 8.507059e+37
    %v1565 = vand.u32 %v1519, 2147483648
    %v1566 = vor.u32 1.1754944e-38, %v1565
    %v1567 = vsel %vm1564, %v1566, %v1562
    %v1568 = vmul.f32 %v1490, %v1567
    %v1569 = vrcp.pop %v1522
    %v1570 = vmul.f32 %v1522, %v1569
    %v1571 = vsub.f32 1.0, %v1570
    %v1572 = vmul.f32 %v1569, %v1571
    %v1573 = vadd.f32 %v1569, %v1572
    %vm1574 = vweird.f32 %v1522
    %vm1575 = vweird.f32 %v1569
    %vm1576 = vmor %vm1574, %vm1575
    %v1577 = vsel %vm1576, %v1569, %v1573
    %v1578 = vand.u32 2147483647, %v1522
    %vm1579 = vcmp.eq.f32.partialorder %v1578, 8.507059e+37
    %v1580 = vand.u32 %v1522, 2147483648
    %v1581 = vor.u32 1.1754944e-38, %v1580
    %v1582 = vsel %vm1579, %v1581, %v1577
    %v1583 = vmul.f32 %v1493, %v1582
    %1584 = vxpose.xlu0.b32.start [1/16] %v358, 128
    %1585 = vxpose.xlu0.b32.cont [2/16] %v361, 128
    %1586 = vxpose.xlu0.b32.cont [3/16] %v364, 128
    %1587 = vxpose.xlu0.b32.cont [4/16] %v367, 128
    %1588 = vxpose.xlu0.b32.cont [5/16] 0.0, 128
    %1589 = vxpose.xlu0.b32.cont [6/16] 0.0, 128
    %1590 = vxpose.xlu0.b32.cont [7/16] 0.0, 128
    %1591 = vxpose.xlu0.b32.cont [8/16] 0.0, 128
    %1592 = vxpose.xlu0.b32.cont [9/16] 0.0, 128
    %1593 = vxpose.xlu0.b32.cont [10/16] 0.0, 128
    %1594 = vxpose.xlu0.b32.cont [11/16] 0.0, 128
    %1595 = vxpose.xlu0.b32.cont [12/16] 0.0, 128
    %1596 = vxpose.xlu0.b32.cont [13/16] 0.0, 128
    %1597 = vxpose.xlu0.b32.cont [14/16] 0.0, 128
    %1598 = vxpose.xlu0.b32.cont [15/16] 0.0, 128
    %1599 = vxpose.xlu0.b32.end [16/16] 0.0, 128
    %v1600 = vpop.trf.xlu0
    %v1601 = vpop.trf.xlu0
    %v1602 = vpop.trf.xlu0
    %v1603 = vpop.trf.xlu0
    %v1604 = vpop.trf.xlu0
    %v1605 = vpop.trf.xlu0
    %v1606 = vpop.trf.xlu0
    %v1607 = vpop.trf.xlu0
    %v1608 = vpop.trf.xlu0
    %v1609 = vpop.trf.xlu0
    %v1610 = vpop.trf.xlu0
    %v1611 = vpop.trf.xlu0
    %v1612 = vpop.trf.xlu0
    %v1613 = vpop.trf.xlu0
    %v1614 = vpop.trf.xlu0
    %v1615 = vpop.trf.xlu0
    %1620 = vrot.lane.b32.xlu0 %v1600, 32
    %v1621 = vpop.permute.xlu0 %1620
    %1622 = vrot.lane.b32.xlu0 %v1601, 32
    %v1623 = vpop.permute.xlu0 %1622
    %1624 = vrot.lane.b32.xlu0 %v1602, 32
    %v1625 = vpop.permute.xlu0 %1624
    %1626 = vrot.lane.b32.xlu0 %v1603, 32
    %v1627 = vpop.permute.xlu0 %1626
    %1632 = vrot.lane.b32.xlu0 %v1600, 64
    %v1633 = vpop.permute.xlu0 %1632
    %1634 = vrot.lane.b32.xlu0 %v1601, 64
    %v1635 = vpop.permute.xlu0 %1634
    %1636 = vrot.lane.b32.xlu0 %v1602, 64
    %v1637 = vpop.permute.xlu0 %1636
    %1638 = vrot.lane.b32.xlu0 %v1603, 64
    %v1639 = vpop.permute.xlu0 %1638
    %1644 = vrot.lane.b32.xlu0 %v1600, 96
    %v1645 = vpop.permute.xlu0 %1644
    %1646 = vrot.lane.b32.xlu0 %v1601, 96
    %v1647 = vpop.permute.xlu0 %1646
    %1648 = vrot.lane.b32.xlu0 %v1602, 96
    %v1649 = vpop.permute.xlu0 %1648
    %1650 = vrot.lane.b32.xlu0 %v1603, 96
    %v1651 = vpop.permute.xlu0 %1650
    %v1656 = vsel %vm41, %v1600, %v1621
    %v1657 = vsel %vm41, %v1601, %v1623
    %v1658 = vsel %vm41, %v1602, %v1625
    %v1659 = vsel %vm41, %v1603, %v1627
    %v1660 = vsel %vm481, %v1656, %v1633
    %v1661 = vsel %vm481, %v1657, %v1635
    %v1662 = vsel %vm481, %v1658, %v1637
    %v1663 = vsel %vm481, %v1659, %v1639
    %v1664 = vsel %vm486, %v1660, %v1645
    %v1665 = vsel %vm486, %v1661, %v1647
    %v1666 = vsel %vm486, %v1662, %v1649
    %v1667 = vsel %vm486, %v1663, %v1651
    %v1668 = vmul.f32 %v1664, %v385
    %v1669 = vmul.f32 %v1665, %v386
    %v1670 = vmul.f32 %v1666, %v387
    %v1671 = vmul.f32 %v1667, %v388
    %1672 = vrot.lane.b32.xlu0 %v317, 32
    %v1673 = vpop.permute.xlu0 %1672
    %1674 = vrot.lane.b32.xlu0 %v320, 32
    %v1675 = vpop.permute.xlu0 %1674
    %1676 = vrot.lane.b32.xlu0 %v323, 32
    %v1677 = vpop.permute.xlu0 %1676
    %1678 = vrot.lane.b32.xlu0 %v326, 32
    %v1679 = vpop.permute.xlu0 %1678
    %v1680 = vsel %vm41, %v1673, 0
    %v1682 = vsel %vm41, %v1675, 0
    %v1684 = vsel %vm41, %v1677, 0
    %v1686 = vsel %vm41, %v1679, 0
    %1688 = vmatpush.msra.mxu0 0.0
    %1689 = vmatpush.msra.mxu0 0.0
    %1690 = vmatpush.msra.mxu0 0.0
    %1691 = vmatpush.msra.mxu0 0.0
    %1692 = vmatpush.msra.mxu0 0.0
    %1693 = vmatpush.msra.mxu0 0.0
    %1694 = vmatpush.msra.mxu0 0.0
    %1695 = vmatpush.msra.mxu0 0.0
    %1696 = vmatpush.msra.mxu0 0.0
    %1697 = vmatpush.msra.mxu0 0.0
    %1698 = vmatpush.msra.mxu0 0.0
    %1699 = vmatpush.msra.mxu0 0.0
    %1700 = vmatpush.msra.mxu0 %v1671
    %1701 = vmatpush.msra.mxu0 %v1670
    %1702 = vmatpush.msra.mxu0 %v1669
    %1703 = vmatpush.msra.mxu0 %v1668
    %1704 = vmatmul.f32.gmra.mxu0 %v1680
    %v1705 = vpop.f32.mrf.mxu0
    %v1706 = vadd.f32 0.0, %v1705
    %1707 = vmatmul.f32.gmra.mxu0 %v1682
    %v1708 = vpop.f32.mrf.mxu0
    %v1709 = vadd.f32 0.0, %v1708
    %1710 = vmatmul.f32.gmra.mxu0 %v1684
    %v1711 = vpop.f32.mrf.mxu0
    %v1712 = vadd.f32 0.0, %v1711
    %1713 = vmatmul.f32.gmra.mxu0 %v1686
    %v1714 = vpop.f32.mrf.mxu0
    %v1715 = vadd.f32 0.0, %v1714
    %1716 = vdwg.mxu0
    %v1717 = vmul.f32 %v1706, 0.35355338
    %v1718 = vmul.f32 %v1709, 0.35355338
    %v1719 = vmul.f32 %v1712, 0.35355338
    %v1720 = vmul.f32 %v1715, 0.35355338
    %1721 = vmax.xlane.f32.xlu0 %v1717
    %v1722 = vpop.xlane.xlu0 %1721
    %1723 = vmax.xlane.f32.xlu0 %v1718
    %v1724 = vpop.xlane.xlu0 %1723
    %1725 = vmax.xlane.f32.xlu0 %v1719
    %v1726 = vpop.xlane.xlu0 %1725
    %1727 = vmax.xlane.f32.xlu0 %v1720
    %v1728 = vpop.xlane.xlu0 %1727
    %v1729 = vsub.f32 %v1717, %v1722
    %v1730 = vsub.f32 %v1718, %v1724
    %v1731 = vsub.f32 %v1719, %v1726
    %v1732 = vsub.f32 %v1720, %v1728
    %v1733 = vmul.f32 %v1729, 1.442695
    %v1734 = vpow.pop %v1733
    %v1735 = vmul.f32 %v1730, 1.442695
    %v1736 = vpow.pop %v1735
    %v1737 = vmul.f32 %v1731, 1.442695
    %v1738 = vpow.pop %v1737
    %v1739 = vmul.f32 %v1732, 1.442695
    %v1740 = vpow.pop %v1739
    %v1741 = vmul.f32 %v358, %v1339
    %v1742 = vmul.f32 %v361, %v1341
    %v1743 = vmul.f32 %v364, %v1343
    %v1744 = vmul.f32 %v367, %v1345
    %v1745 = vmul.f32 %v358, %v1347
    %v1746 = vmul.f32 %v361, %v1349
    %v1747 = vmul.f32 %v364, %v1351
    %v1748 = vmul.f32 %v367, %v1353
    %v1749 = vmul.f32 %v358, %v1355
    %v1750 = vmul.f32 %v361, %v1357
    %v1751 = vmul.f32 %v364, %v1359
    %v1752 = vmul.f32 %v367, %v1361
    %v1753 = vmul.f32 %v358, %v1363
    %v1754 = vmul.f32 %v361, %v1365
    %v1755 = vmul.f32 %v364, %v1367
    %v1756 = vmul.f32 %v367, %v1369
    %1773 = vrot.lane.b32.xlu0 %v1741, 96
    %v1774 = vpop.permute.xlu0 %1773
    %1775 = vrot.lane.b32.xlu0 %v1742, 96
    %v1776 = vpop.permute.xlu0 %1775
    %1777 = vrot.lane.b32.xlu0 %v1743, 96
    %v1778 = vpop.permute.xlu0 %1777
    %1779 = vrot.lane.b32.xlu0 %v1744, 96
    %v1780 = vpop.permute.xlu0 %1779
    %1781 = vrot.lane.b32.xlu0 %v1745, 96
    %v1782 = vpop.permute.xlu0 %1781
    %1783 = vrot.lane.b32.xlu0 %v1746, 96
    %v1784 = vpop.permute.xlu0 %1783
    %1785 = vrot.lane.b32.xlu0 %v1747, 96
    %v1786 = vpop.permute.xlu0 %1785
    %1787 = vrot.lane.b32.xlu0 %v1748, 96
    %v1788 = vpop.permute.xlu0 %1787
    %1789 = vrot.lane.b32.xlu0 %v1749, 96
    %v1790 = vpop.permute.xlu0 %1789
    %1791 = vrot.lane.b32.xlu0 %v1750, 96
    %v1792 = vpop.permute.xlu0 %1791
    %1793 = vrot.lane.b32.xlu0 %v1751, 96
    %v1794 = vpop.permute.xlu0 %1793
    %1795 = vrot.lane.b32.xlu0 %v1752, 96
    %v1796 = vpop.permute.xlu0 %1795
    %1797 = vrot.lane.b32.xlu0 %v1753, 96
    %v1798 = vpop.permute.xlu0 %1797
    %1799 = vrot.lane.b32.xlu0 %v1754, 96
    %v1800 = vpop.permute.xlu0 %1799
    %1801 = vrot.lane.b32.xlu0 %v1755, 96
    %v1802 = vpop.permute.xlu0 %1801
    %1803 = vrot.lane.b32.xlu0 %v1756, 96
    %v1804 = vpop.permute.xlu0 %1803
    %1821 = vmatpush.msra.mxu0 %v1804
    %1822 = vmatpush.msra.mxu0 %v1802
    %1823 = vmatpush.msra.mxu0 %v1800
    %1824 = vmatpush.msra.mxu0 %v1798
    %1825 = vmatpush.msra.mxu0 %v1796
    %1826 = vmatpush.msra.mxu0 %v1794
    %1827 = vmatpush.msra.mxu0 %v1792
    %1828 = vmatpush.msra.mxu0 %v1790
    %1829 = vmatpush.msra.mxu0 %v1788
    %1830 = vmatpush.msra.mxu0 %v1786
    %1831 = vmatpush.msra.mxu0 %v1784
    %1832 = vmatpush.msra.mxu0 %v1782
    %1833 = vmatpush.msra.mxu0 %v1780
    %1834 = vmatpush.msra.mxu0 %v1778
    %1835 = vmatpush.msra.mxu0 %v1776
    %1836 = vmatpush.msra.mxu0 %v1774
    %1837 = vmatmul.f32.gmra.mxu0 %v1734
    %v1838 = vpop.f32.mrf.mxu0
    %v1839 = vadd.f32 0.0, %v1838
    %1840 = vmatmul.f32.gmra.mxu0 %v1736
    %v1841 = vpop.f32.mrf.mxu0
    %v1842 = vadd.f32 0.0, %v1841
    %1843 = vmatmul.f32.gmra.mxu0 %v1738
    %v1844 = vpop.f32.mrf.mxu0
    %v1845 = vadd.f32 0.0, %v1844
    %1846 = vmatmul.f32.gmra.mxu0 %v1740
    %v1847 = vpop.f32.mrf.mxu0
    %v1848 = vadd.f32 0.0, %v1847
    %1849 = vdwg.mxu0
    %1850 = vmatpush.msra.mxu0 %v384
    %1851 = vmatpush.msra.mxu0 %v383
    %1852 = vmatpush.msra.mxu0 %v382
    %1853 = vmatpush.msra.mxu0 %v381
    %1854 = vmatpush.msra.mxu0 %v380
    %1855 = vmatpush.msra.mxu0 %v379
    %1856 = vmatpush.msra.mxu0 %v378
    %1857 = vmatpush.msra.mxu0 %v377
    %1858 = vmatpush.msra.mxu0 %v376
    %1859 = vmatpush.msra.mxu0 %v375
    %1860 = vmatpush.msra.mxu0 %v374
    %1861 = vmatpush.msra.mxu0 %v373
    %1862 = vmatpush.msra.mxu0 %v372
    %1863 = vmatpush.msra.mxu0 %v371
    %1864 = vmatpush.msra.mxu0 %v370
    %1865 = vmatpush.msra.mxu0 %v369
    %1866 = vmatmul.f32.gmra.mxu0 %v1734
    %v1867 = vpop.f32.mrf.mxu0
    %v1868 = vadd.f32 0.0, %v1867
    %1869 = vmatmul.f32.gmra.mxu0 %v1736
    %v1870 = vpop.f32.mrf.mxu0
    %v1871 = vadd.f32 0.0, %v1870
    %1872 = vmatmul.f32.gmra.mxu0 %v1738
    %v1873 = vpop.f32.mrf.mxu0
    %v1874 = vadd.f32 0.0, %v1873
    %1875 = vmatmul.f32.gmra.mxu0 %v1740
    %v1876 = vpop.f32.mrf.mxu0
    %v1877 = vadd.f32 0.0, %v1876
    %1878 = vdwg.mxu0
    %v1879 = vrcp.pop %v1868
    %v1880 = vmul.f32 %v1868, %v1879
    %v1881 = vsub.f32 1.0, %v1880
    %v1882 = vmul.f32 %v1879, %v1881
    %v1883 = vadd.f32 %v1879, %v1882
    %vm1884 = vweird.f32 %v1868
    %vm1885 = vweird.f32 %v1879
    %vm1886 = vmor %vm1884, %vm1885
    %v1887 = vsel %vm1886, %v1879, %v1883
    %v1888 = vand.u32 2147483647, %v1868
    %vm1889 = vcmp.eq.f32.partialorder %v1888, 8.507059e+37
    %v1890 = vand.u32 %v1868, 2147483648
    %v1891 = vor.u32 1.1754944e-38, %v1890
    %v1892 = vsel %vm1889, %v1891, %v1887
    %v1893 = vmul.f32 %v1839, %v1892
    %v1894 = vrcp.pop %v1871
    %v1895 = vmul.f32 %v1871, %v1894
    %v1896 = vsub.f32 1.0, %v1895
    %v1897 = vmul.f32 %v1894, %v1896
    %v1898 = vadd.f32 %v1894, %v1897
    %vm1899 = vweird.f32 %v1871
    %vm1900 = vweird.f32 %v1894
    %vm1901 = vmor %vm1899, %vm1900
    %v1902 = vsel %vm1901, %v1894, %v1898
    %v1903 = vand.u32 2147483647, %v1871
    %vm1904 = vcmp.eq.f32.partialorder %v1903, 8.507059e+37
    %v1905 = vand.u32 %v1871, 2147483648
    %v1906 = vor.u32 1.1754944e-38, %v1905
    %v1907 = vsel %vm1904, %v1906, %v1902
    %v1908 = vmul.f32 %v1842, %v1907
    %v1909 = vrcp.pop %v1874
    %v1910 = vmul.f32 %v1874, %v1909
    %v1911 = vsub.f32 1.0, %v1910
    %v1912 = vmul.f32 %v1909, %v1911
    %v1913 = vadd.f32 %v1909, %v1912
    %vm1914 = vweird.f32 %v1874
    %vm1915 = vweird.f32 %v1909
    %vm1916 = vmor %vm1914, %vm1915
    %v1917 = vsel %vm1916, %v1909, %v1913
    %v1918 = vand.u32 2147483647, %v1874
    %vm1919 = vcmp.eq.f32.partialorder %v1918, 8.507059e+37
    %v1920 = vand.u32 %v1874, 2147483648
    %v1921 = vor.u32 1.1754944e-38, %v1920
    %v1922 = vsel %vm1919, %v1921, %v1917
    %v1923 = vmul.f32 %v1845, %v1922
    %v1924 = vrcp.pop %v1877
    %v1925 = vmul.f32 %v1877, %v1924
    %v1926 = vsub.f32 1.0, %v1925
    %v1927 = vmul.f32 %v1924, %v1926
    %v1928 = vadd.f32 %v1924, %v1927
    %vm1929 = vweird.f32 %v1877
    %vm1930 = vweird.f32 %v1924
    %vm1931 = vmor %vm1929, %vm1930
    %v1932 = vsel %vm1931, %v1924, %v1928
    %v1933 = vand.u32 2147483647, %v1877
    %vm1934 = vcmp.eq.f32.partialorder %v1933, 8.507059e+37
    %v1935 = vand.u32 %v1877, 2147483648
    %v1936 = vor.u32 1.1754944e-38, %v1935
    %v1937 = vsel %vm1934, %v1936, %v1932
    %v1938 = vmul.f32 %v1848, %v1937
    %1947 = vrot.lane.b32.xlu0 %v1538, 32
    %v1948 = vpop.permute.xlu0 %1947
    %1949 = vrot.lane.b32.xlu0 %v1553, 32
    %v1950 = vpop.permute.xlu0 %1949
    %1951 = vrot.lane.b32.xlu0 %v1568, 32
    %v1952 = vpop.permute.xlu0 %1951
    %1953 = vrot.lane.b32.xlu0 %v1583, 32
    %v1954 = vpop.permute.xlu0 %1953
    %1955 = vrot.lane.b32.xlu0 %v1893, 32
    %v1956 = vpop.permute.xlu0 %1955
    %1957 = vrot.lane.b32.xlu0 %v1908, 32
    %v1958 = vpop.permute.xlu0 %1957
    %1959 = vrot.lane.b32.xlu0 %v1923, 32
    %v1960 = vpop.permute.xlu0 %1959
    %1961 = vrot.lane.b32.xlu0 %v1938, 32
    %v1962 = vpop.permute.xlu0 %1961
    %v1971 = vsel %vm41, %v772, %v1948
    %v1972 = vsel %vm41, %v787, %v1950
    %v1973 = vsel %vm41, %v802, %v1952
    %v1974 = vsel %vm41, %v817, %v1954
    %v1975 = vsel %vm41, %v1135, %v1956
    %v1976 = vsel %vm41, %v1150, %v1958
    %v1977 = vsel %vm41, %v1165, %v1960
    %v1978 = vsel %vm41, %v1180, %v1962
    %v1979 = vld [vmem:[%s5] sm:$0xff]
    %v1980 = vld [vmem:[%s5 + $0x8] sm:$0xff]
    %v1981 = vld [vmem:[%s5 + $0x10] sm:$0xff]
    %v1982 = vld [vmem:[%s5 + $0x18] sm:$0xff]
    %v1983 = vld [vmem:[%s5 + $0x20] sm:$0xff]
    %v1984 = vld [vmem:[%s5 + $0x28] sm:$0xff]
    %v1985 = vld [vmem:[%s5 + $0x30] sm:$0xff]
    %v1986 = vld [vmem:[%s5 + $0x38] sm:$0xff]
    %v1987 = vld [vmem:[%s6] sm:$0x1]
    %v1989 = vperm.slane %v1987, 0
    %v1992 = vsel %vm481, %v1971, 0
    %v1995 = vsel %vm481, %v1972, 0
    %v1998 = vsel %vm481, %v1973, 0
    %v2001 = vsel %vm481, %v1974, 0
    %v2004 = vsel %vm481, %v1975, 0
    %v2007 = vsel %vm481, %v1976, 0
    %v2010 = vsel %vm481, %v1977, 0
    %v2013 = vsel %vm481, %v1978, 0
    %2015 = vmatpush.msra.mxu0 0.0
    %2016 = vmatpush.msra.mxu0 0.0
    %2017 = vmatpush.msra.mxu0 0.0
    %2018 = vmatpush.msra.mxu0 0.0
    %2019 = vmatpush.msra.mxu0 0.0
    %2020 = vmatpush.msra.mxu0 0.0
    %2021 = vmatpush.msra.mxu0 0.0
    %2022 = vmatpush.msra.mxu0 0.0
    %2023 = vmatpush.msra.mxu0 %v1986
    %2024 = vmatpush.msra.mxu0 %v1985
    %2025 = vmatpush.msra.mxu0 %v1984
    %2026 = vmatpush.msra.mxu0 %v1983
    %2027 = vmatpush.msra.mxu0 %v1982
    %2028 = vmatpush.msra.mxu0 %v1981
    %2029 = vmatpush.msra.mxu0 %v1980
    %2030 = vmatpush.msra.mxu0 %v1979
    %2031 = vmatmul.f32.gmra.mxu0 %v1992
    %v2032 = vpop.f32.mrf.mxu0
    %v2033 = vadd.f32 %v1989, %v2032
    %2034 = vmatmul.f32.gmra.mxu0 %v1995
    %v2035 = vpop.f32.mrf.mxu0
    %v2036 = vadd.f32 %v1989, %v2035
    %2037 = vmatmul.f32.gmra.mxu0 %v1998
    %v2038 = vpop.f32.mrf.mxu0
    %v2039 = vadd.f32 %v1989, %v2038
    %2040 = vmatmul.f32.gmra.mxu0 %v2001
    %v2041 = vpop.f32.mrf.mxu0
    %v2042 = vadd.f32 %v1989, %v2041
    %2043 = vmatmul.f32.gmra.mxu0 %v2004
    %v2044 = vpop.f32.mrf.mxu0
    %v2045 = vadd.f32 %v1989, %v2044
    %2046 = vmatmul.f32.gmra.mxu0 %v2007
    %v2047 = vpop.f32.mrf.mxu0
    %v2048 = vadd.f32 %v1989, %v2047
    %2049 = vmatmul.f32.gmra.mxu0 %v2010
    %v2050 = vpop.f32.mrf.mxu0
    %v2051 = vadd.f32 %v1989, %v2050
    %2052 = vmatmul.f32.gmra.mxu0 %v2013
    %v2053 = vpop.f32.mrf.mxu0
    %v2054 = vadd.f32 %v1989, %v2053
    %2055 = vdwg.mxu0
    %2060 = vrot.lane.b32.xlu0 %v2033, 96
    %v2061 = vpop.permute.xlu0 %2060
    %2062 = vrot.lane.b32.xlu0 %v2036, 96
    %v2063 = vpop.permute.xlu0 %2062
    %2064 = vrot.lane.b32.xlu0 %v2039, 96
    %v2065 = vpop.permute.xlu0 %2064
    %2066 = vrot.lane.b32.xlu0 %v2042, 96
    %v2067 = vpop.permute.xlu0 %2066
    %v2072 = vsel %vm41, %v2033, 0
    %v2074 = vsel %vm41, %v2036, 0
    %v2076 = vsel %vm41, %v2039, 0
    %v2078 = vsel %vm41, %v2042, 0
    %2080 = vmatpush.msra.mxu0 0.0
    %2081 = vmatpush.msra.mxu0 0.0
    %2082 = vmatpush.msra.mxu0 0.0
    %2083 = vmatpush.msra.mxu0 0.0
    %2084 = vmatpush.msra.mxu0 0.0
    %2085 = vmatpush.msra.mxu0 0.0
    %2086 = vmatpush.msra.mxu0 0.0
    %2087 = vmatpush.msra.mxu0 0.0
    %2088 = vmatpush.msra.mxu0 0.0
    %2089 = vmatpush.msra.mxu0 0.0
    %2090 = vmatpush.msra.mxu0 0.0
    %2091 = vmatpush.msra.mxu0 0.0
    %2092 = vmatpush.msra.mxu0 %v2067
    %2093 = vmatpush.msra.mxu0 %v2065
    %2094 = vmatpush.msra.mxu0 %v2063
    %2095 = vmatpush.msra.mxu0 %v2061
    %2096 = vmatmul.f32.gmra.mxu0 %v2072
    %v2097 = vpop.f32.mrf.mxu0
    %v2098 = vadd.f32 0.0, %v2097
    %2099 = vmatmul.f32.gmra.mxu0 %v2074
    %v2100 = vpop.f32.mrf.mxu0
    %v2101 = vadd.f32 0.0, %v2100
    %2102 = vmatmul.f32.gmra.mxu0 %v2076
    %v2103 = vpop.f32.mrf.mxu0
    %v2104 = vadd.f32 0.0, %v2103
    %2105 = vmatmul.f32.gmra.mxu0 %v2078
    %v2106 = vpop.f32.mrf.mxu0
    %v2107 = vadd.f32 0.0, %v2106
    %2108 = vdwg.mxu0
    %2113 = vrot.lane.b32.xlu0 %v2045, 96
    %v2114 = vpop.permute.xlu0 %2113
    %2115 = vrot.lane.b32.xlu0 %v2048, 96
    %v2116 = vpop.permute.xlu0 %2115
    %2117 = vrot.lane.b32.xlu0 %v2051, 96
    %v2118 = vpop.permute.xlu0 %2117
    %2119 = vrot.lane.b32.xlu0 %v2054, 96
    %v2120 = vpop.permute.xlu0 %2119
    %v2125 = vsel %vm41, %v2045, 0
    %v2127 = vsel %vm41, %v2048, 0
    %v2129 = vsel %vm41, %v2051, 0
    %v2131 = vsel %vm41, %v2054, 0
    %2133 = vmatpush.msra.mxu0 0.0
    %2134 = vmatpush.msra.mxu0 0.0
    %2135 = vmatpush.msra.mxu0 0.0
    %2136 = vmatpush.msra.mxu0 0.0
    %2137 = vmatpush.msra.mxu0 0.0
    %2138 = vmatpush.msra.mxu0 0.0
    %2139 = vmatpush.msra.mxu0 0.0
    %2140 = vmatpush.msra.mxu0 0.0
    %2141 = vmatpush.msra.mxu0 0.0
    %2142 = vmatpush.msra.mxu0 0.0
    %2143 = vmatpush.msra.mxu0 0.0
    %2144 = vmatpush.msra.mxu0 0.0
    %2145 = vmatpush.msra.mxu0 %v2120
    %2146 = vmatpush.msra.mxu0 %v2118
    %2147 = vmatpush.msra.mxu0 %v2116
    %2148 = vmatpush.msra.mxu0 %v2114
    %2149 = vmatmul.f32.gmra.mxu0 %v2125
    %v2150 = vpop.f32.mrf.mxu0
    %v2151 = vadd.f32 0.0, %v2150
    %2152 = vmatmul.f32.gmra.mxu0 %v2127
    %v2153 = vpop.f32.mrf.mxu0
    %v2154 = vadd.f32 0.0, %v2153
    %2155 = vmatmul.f32.gmra.mxu0 %v2129
    %v2156 = vpop.f32.mrf.mxu0
    %v2157 = vadd.f32 0.0, %v2156
    %2158 = vmatmul.f32.gmra.mxu0 %v2131
    %v2159 = vpop.f32.mrf.mxu0
    %v2160 = vadd.f32 0.0, %v2159
    %2161 = vdwg.mxu0
    %2162 = vst.msk [vmem:[#allocation2] sm:$0xff] %vm41, %v2098
    %2163 = vst.msk [vmem:[#allocation2 + $0x8] sm:$0xff] %vm41, %v2101
    %2164 = vst.msk [vmem:[#allocation2 + $0x10] sm:$0xff] %vm41, %v2104
    %2165 = vst.msk [vmem:[#allocation2 + $0x18] sm:$0xff] %vm41, %v2107
    %2166 = vst.msk [vmem:[#allocation2 + $0x20] sm:$0xff] %vm41, %v2151
    %2167 = vst.msk [vmem:[#allocation2 + $0x28] sm:$0xff] %vm41, %v2154
    %2168 = vst.msk [vmem:[#allocation2 + $0x30] sm:$0xff] %vm41, %v2157
    %2169 = vst.msk [vmem:[#allocation2 + $0x38] sm:$0xff] %vm41, %v2160
    // Predicated region
    $region38: #{gatn_attention_block.1} parent=1 // pred_check
      _
    $region39: #{gatn_attention_block.1} parent=1 // pred_check_branch
      %2171 = sbr.rel (0) target = $region41
    $region40: #{gatn_attention_block.1} parent=1 // pred_region
      %2173 = vsyncadd [#allocation3], 0
      %s2174 = sshll.u32 [#allocation2], 4
      %s2175 = int_to_ptr.vmem [resolvable:$true] %s2174
      %s2176 = sshll.u32 %s9, 4
      %s2177 = int_to_ptr.hbm [resolvable:$true] %s2176
      %2182 = dma.vmem_to_hbm [thread:$0]  %s2175, 1024, %s2177, [#allocation3], 128, 128, 8
    $region41: #{gatn_attention_block.1} parent=1 // pred_fallthru
      _
    // Predicated region
    $region42: #{gatn_attention_block.1} parent=1 // pred_check
      _
    $region43: #{gatn_attention_block.1} parent=1 // pred_check_branch
      %2184 = sbr.rel (0) target = $region45
    $region44: #{gatn_attention_block.1} parent=1 // pred_region
      %2186 = dma.done [#allocation3], 1024
    $region45: #{gatn_attention_block.1} parent=1 // pred_fallthru
      _
    %2187 = vsyncpa [#allocation3], 1

</llo_original>
